<compile_context>
chip_gen: v7x
topology: tpu7x:2x2x1
jax: 0.10.0
libtpu: 0.0.40
codegen_flags: <defaults>
</compile_context>

<pallas_src>
import jax
import jax.numpy as jnp
from jax.experimental import pallas as pl
from jax.experimental.pallas import tpu as pltpu


# ------------------------------ Pallas kernel ---------------------------------
def _gemm_bias_kernel(w_ref, a_ref, b_ref, o_ref):
    # w_ref: (Cout, K) bf16   a_ref: (1, K, TM) bf16   b_ref: (Cout, 1) f32
    acc = jnp.dot(w_ref[...], a_ref[0], preferred_element_type=jnp.float32)
    o_ref[0] = (acc + b_ref[...]).astype(o_ref.dtype)


# ------------------------------ tile selection ---------------------------------
def _pick_m_tile(n_batch, s_out, k, cout, vmem_budget_bytes=12 * 1024 * 1024):
    """Largest M tile whose double-buffered working set fits the VMEM budget."""
    def vmem_bytes(tm):
        a_tile = 2 * k * tm * 2        # bf16 A tile, double-buffered
        w_tile = 2 * cout * k * 2      # bf16 weights (counted double-buffered)
        o_tile = 2 * cout * tm * 4     # f32 output tile, double-buffered
        return a_tile + w_tile + o_tile + cout * 4

    if s_out <= 128:
        return s_out                   # full-extent block: always legal
    tm = 128
    for cand in (2048, 1024, 512, 256, 128):
        if cand <= s_out and vmem_bytes(cand) <= vmem_budget_bytes:
            tm = cand
            break
    # v7x megacore: keep >= 2 'parallel' grid steps so both TensorCores work.
    while n_batch * pl.cdiv(s_out, tm) < 2 and tm > 128:
        tm //= 2
    return tm


# ------------------------------ forward wrapper -------------------------------
def downsampling_forward(x_ncdhw, w_oidhw, bias, out_dtype=jnp.float32):
    """Conv3d(C -> 2C, kernel=3, stride=2, padding=1) on NCDHW input."""
    n, c, d, h, w = x_ncdhw.shape
    cout = w_oidhw.shape[0]
    do = (d - 1) // 2 + 1
    ho = (h - 1) // 2 + 1
    wo = (w - 1) // 2 + 1
    s_out = do * ho * wo
    k = 27 * c

    # ---- layout plumbing in XLA: channel-major im2col, built in bf16 ----
    # (no NCDHW<->NDHWC transposes; the GEMM consumes/produces NC(S) directly)
    xb = x_ncdhw.astype(jnp.bfloat16)                    # cast BEFORE pad/slices
    xp = jnp.pad(xb, ((0, 0), (0, 0), (1, 1), (1, 1), (1, 1)))
    taps = []
    for kd in range(3):
        for kh in range(3):
            for kw in range(3):
                taps.append(xp[:, :, kd:kd + 2 * do:2,
                                     kh:kh + 2 * ho:2,
                                     kw:kw + 2 * wo:2])          # (N, C, Do, Ho, Wo)
    a = jnp.concatenate(taps, axis=1).reshape(n, k, s_out)       # (N, 27C, S) bf16

    # PyTorch weight (Cout, Cin, kD, kH, kW) -> (Cout, kD, kH, kW, Cin) -> (Cout, 27*Cin)
    w_mat = jnp.transpose(w_oidhw, (0, 2, 3, 4, 1)).reshape(cout, k).astype(jnp.bfloat16)
    b_mat = bias.reshape(cout, 1).astype(jnp.float32)

    tm = _pick_m_tile(n, s_out, k, cout)
    grid = (n, pl.cdiv(s_out, tm))

    out = pl.pallas_call(
        _gemm_bias_kernel,
        out_shape=jax.ShapeDtypeStruct((n, cout, s_out), out_dtype),
        grid=grid,
        in_specs=[
            pl.BlockSpec((cout, k), lambda i, m: (0, 0)),        # weights (VMEM-resident)
            pl.BlockSpec((1, k, tm), lambda i, m: (i, 0, m)),    # im2col activations
            pl.BlockSpec((cout, 1), lambda i, m: (0, 0)),        # bias
        ],
        out_specs=pl.BlockSpec((1, cout, tm), lambda i, m: (i, 0, m)),
        compiler_params=pltpu.CompilerParams(
            dimension_semantics=("parallel", "parallel")),
    )(w_mat, a, b_mat)

    return out.reshape(n, cout, do, ho, wo)                      # already NCDHW


# ---------------------------- pure-JAX reference -------------------------------
def downsampling_ref(x, w_oidhw, bias):
    out = jax.lax.conv_general_dilated(
        x, w_oidhw, window_strides=(2, 2, 2),
        padding=((1, 1), (1, 1), (1, 1)),
        dimension_numbers=("NCDHW", "OIDHW", "NCDHW"),
        precision=jax.lax.Precision.HIGHEST)
    return out + bias[None, :, None, None, None]


# ------------------------------------ main -------------------------------------
if __name__ == "__main__":
    # C=64 -> Cout=128 keeps the channel axis a full sublane multiple.
    N, C, D, H, W = 2, 64, 8, 8, 8
    COUT = 2 * C

    key = jax.random.PRNGKey(0)
    kx, kw, kb = jax.random.split(key, 3)
    x = jax.random.normal(kx, (N, C, D, H, W), dtype=jnp.float32)
    w = jax.random.normal(kw, (COUT, C, 3, 3, 3), dtype=jnp.float32) * 0.05
    b = jax.random.normal(kb, (COUT,), dtype=jnp.float32) * 0.05

    out = jax.jit(downsampling_forward)(x, w, b)
    out = jax.block_until_ready(out)

    ref = downsampling_ref(x, w, b)
    assert out.shape == (N, COUT, D // 2, H // 2, W // 2), out.shape
    max_diff = float(jnp.max(jnp.abs(out - ref)))
    # bf16 operands + f32 accumulation vs. f32 reference
    assert jnp.allclose(out, ref, atol=3e-2, rtol=3e-2), f"max abs diff = {max_diff}"

    print("KERNEL_OK")
</pallas_src>

<mosaic_0001>
module attributes {stable_mosaic.version = 11 : i64} {
  func.func @_gemm_bias_kernel(%arg0: i32, %arg1: i32, %arg2: memref<128x1728xbf16, #tpu.memory_space<vmem>>, %arg3: memref<1x1728x64xbf16, #tpu.memory_space<vmem>>, %arg4: memref<128x1xf32, #tpu.memory_space<vmem>>, %arg5: memref<1x128x64xf32, #tpu.memory_space<vmem>>) attributes {dimension_semantics = [#tpu.dimension_semantics<parallel>, #tpu.dimension_semantics<parallel>], iteration_bounds = array<i64: 2, 1>, scalar_prefetch = 0 : i64, scratch_operands = 0 : i64, tpu.core_type = #tpu.core_type<tc>, window_params = [{pipeline_mode = #tpu.pipeline_mode<synchronous>, transform_indices = @transform_0, window_bounds = array<i64: 128, 1728>}, {transform_indices = @transform_1, window_bounds = array<i64: 1, 1728, 64>}, {pipeline_mode = #tpu.pipeline_mode<synchronous>, transform_indices = @transform_2, window_bounds = array<i64: 128, 1>}, {transform_indices = @transform_3, window_bounds = array<i64: 1, 128, 64>}]} {
    %c0 = arith.constant 0 : index
    %c0_0 = arith.constant 0 : index
    %0 = vector.load %arg2[%c0, %c0_0] : memref<128x1728xbf16, #tpu.memory_space<vmem>>, vector<128x1728xbf16>
    %c0_1 = arith.constant 0 : index
    %c0_2 = arith.constant 0 : index
    %c0_3 = arith.constant 0 : index
    %1 = vector.load %arg3[%c0_1, %c0_2, %c0_3] : memref<1x1728x64xbf16, #tpu.memory_space<vmem>>, vector<1x1728x64xbf16>
    %2 = vector.shape_cast %1 : vector<1x1728x64xbf16> to vector<1728x64xbf16>
    %cst = arith.constant dense<0.000000e+00> : vector<128x64xf32>
    %3 = tpu.matmul %0, %2, %cst {dimension_numbers = #tpu.dot_dimension_numbers<[1], [0], [0], [1], [0, 0, 1, 1], [], []>} : vector<128x1728xbf16>, vector<1728x64xbf16>, vector<128x64xf32> -> vector<128x64xf32>
    %c0_4 = arith.constant 0 : index
    %c0_5 = arith.constant 0 : index
    %4 = vector.load %arg4[%c0_4, %c0_5] : memref<128x1xf32, #tpu.memory_space<vmem>>, vector<128x1xf32>
    %5 = vector.broadcast %4 : vector<128x1xf32> to vector<128x64xf32>
    %6 = arith.addf %3, %5 : vector<128x64xf32>
    %c0_6 = arith.constant 0 : index
    %c0_7 = arith.constant 0 : index
    %c0_8 = arith.constant 0 : index
    %7 = vector.load %arg5[%c0_6, %c0_7, %c0_8] : memref<1x128x64xf32, #tpu.memory_space<vmem>>, vector<1x128x64xf32>
    %8 = vector.shape_cast %7 : vector<1x128x64xf32> to vector<128x64xf32>
    %9 = vector.shape_cast %6 : vector<128x64xf32> to vector<1x128x64xf32>
    tpu.vector_store %arg5[%c0_6, %c0_7, %c0_8], %9 {strides = array<i32>} : memref<1x128x64xf32, #tpu.memory_space<vmem>>, vector<1x128x64xf32>,
    return
  }
  func.func @transform_0(%arg0: i32, %arg1: i32) -> (i32, i32) {
    %c0_i32 = arith.constant 0 : i32
    %c0_i32_0 = arith.constant 0 : i32
    %c0_i32_1 = arith.constant 0 : i32
    return %c0_i32, %c0_i32_0 : i32, i32
  }
  func.func @transform_1(%arg0: i32, %arg1: i32) -> (i32, i32, i32) {
    %c0_i32 = arith.constant 0 : i32
    %c0_i32_0 = arith.constant 0 : i32
    return %arg0, %c0_i32, %arg1 : i32, i32, i32
  }
  func.func @transform_2(%arg0: i32, %arg1: i32) -> (i32, i32) {
    %c0_i32 = arith.constant 0 : i32
    %c0_i32_0 = arith.constant 0 : i32
    %c0_i32_1 = arith.constant 0 : i32
    return %c0_i32, %c0_i32_0 : i32, i32
  }
  func.func @transform_3(%arg0: i32, %arg1: i32) -> (i32, i32, i32) {
    %c0_i32 = arith.constant 0 : i32
    %c0_i32_0 = arith.constant 0 : i32
    return %arg0, %c0_i32, %arg1 : i32, i32, i32
  }
}

</mosaic_0001>

<llo_original>
// kernel: downsampling_forward.1
$region0: #{downsampling_forward.1}
  #allocation0 [shape = 'u32[]', space=smem, size = 0x4, offset = 0x4, fixed_abs, tag = 'smem constant byte address 0x4 - core index']
  #allocation1 [shape = 'u32[144,128]{1,0:T(1,128)}', space=vmem, size = 0x12000, scoped, tag = 'internal scratch']
  %s0 = inlined_call_operand.vmem [shape: bf16[128,1728], index: 0, kind: input, shape index: {}]
  %s1 = inlined_call_operand.vmem [shape: bf16[2,1728,64], index: 1, kind: input, shape index: {}]
  %s2 = inlined_call_operand.vmem [shape: f32[128,1], index: 2, kind: input, shape index: {}]
  %s3 = inlined_call_operand.vmem [shape: f32[2,128,64], index: 3, kind: output, shape index: {}]
  %s4 = sld [smem:[#allocation0]]
  $region45: #{downsampling_forward.1} parent=0
    _
  %s6 = ssub.s32 1, %s4
  %s7 = scalar_select 0, %s6, %s4
  loop: start=0, step=1, limit=4
  $region2: #{downsampling_forward.1} parent=0 // loop_pre_header
    _
  $region3: #{downsampling_forward.1} parent=0 // loop_header
    %s9 = sphi 0, %s13
    %p10 = scmp.ge.s32.totalorder %s9, 4
    %s16 = sphi 0, %s28
    %s17 = sphi 0, %s24
    %s18 = sphi 0, %s16
    %s19 = sphi 0, %s17
    %s20 = sphi 0, %s18
    %s21 = sphi 0, %s19
    %s29 = sphi 0, %s29
    %s31 = sphi 0, %s29
    %s32 = sphi 0, %s31
    %s46 = sphi 0, %s32
    %s54 = sphi 0, %s56
    %s57 = sphi 0, %s54
    %s58 = sphi 0, %s57
    %s74 = sphi 0, %s58
    %s78 = sphi 0, %s78
    %s80 = sphi 0, %s78
    %s81 = sphi 0, %s80
    %s95 = sphi 0, %s81
    %s103 = sphi 0, %s105
    %s106 = sphi 0, %s103
    %s107 = sphi 0, %s106
    %s123 = sphi 0, %s107
  $region4: #{downsampling_forward.1} parent=0 // loop_header_branch
    %12 = sbr.rel (%p10) target = $region8
  $region5: #{downsampling_forward.1} parent=0 // loop_body
    %s14 = ssub.s32 %s9, 1
    %s15 = ssub.s32 %s9, 2
    %s22 = sadd.s32 1, %s17
    %p23 = scmp.ge.s32.totalorder %s22, 1
    %s24 = scalar_select %p23, 0, %s22
    %s25 = sadd.s32 1, %s16
    %s26 = scalar_select %p23, %s25, %s16
    %p27 = scmp.ge.s32.totalorder %s26, 2
    %s28 = scalar_select %p27, 0, %s26
    %s30 = sadd.s32 %s29, 1
    %p33 = scmp.eq.s32.totalorder %s9, 1
    %p34 = scmp.ne.s32.totalorder %s29, %s31
    %p35 = scmp.eq.s32.totalorder %s9, 0
    %p36 = por %p34, %p35
    %p37 = scmp.ne.s32.totalorder %s29, %s31
    %p38 = scmp.eq.s32.totalorder %s14, 1
    %p39 = por %p37, %p38
    %p40 = scmp.ne.s32.totalorder %s31, %s32
    %p41 = scmp.eq.s32.totalorder %s14, 0
    %p42 = por %p40, %p41
    %p43 = scmp.ne.s32.totalorder %s31, %s32
    %p44 = scmp.eq.s32.totalorder %s15, 1
    %p45 = por %p43, %p44
    %p47 = scmp.ne.s32.totalorder %s32, %s46
    %p48 = scmp.eq.s32.totalorder %s15, 0
    %p49 = por %p47, %p48
    %s50 = ssub.s32 %s16, %s28
    %s51 = ssub.s32 %s17, %s24
    %s52 = sor.u32 %s50, %s51
    %p53 = scmp.eq.s32.totalorder %s52, 0
    %s55 = sadd.s32 %s54, 1
    %s56 = scalar_select %p53, %s54, %s55
    %p59 = pneg %p53
    %p60 = scmp.eq.s32.totalorder %s9, 1
    %p61 = por %p59, %p60
    %p62 = scmp.ne.s32.totalorder %s54, %s57
    %p63 = scmp.eq.s32.totalorder %s9, 0
    %p64 = por %p62, %p63
    %p65 = scmp.ne.s32.totalorder %s54, %s57
    %p66 = scmp.eq.s32.totalorder %s14, 1
    %p67 = por %p65, %p66
    %p68 = scmp.ne.s32.totalorder %s57, %s58
    %p69 = scmp.eq.s32.totalorder %s14, 0
    %p70 = por %p68, %p69
    %p71 = scmp.ne.s32.totalorder %s57, %s58
    %p72 = scmp.eq.s32.totalorder %s15, 1
    %p73 = por %p71, %p72
    %p75 = scmp.ne.s32.totalorder %s58, %s74
    %p76 = scmp.eq.s32.totalorder %s15, 0
    %p77 = por %p75, %p76
    %s79 = sadd.s32 %s78, 1
    %p82 = scmp.eq.s32.totalorder %s9, 1
    %p83 = scmp.ne.s32.totalorder %s78, %s80
    %p84 = scmp.eq.s32.totalorder %s9, 0
    %p85 = por %p83, %p84
    %p86 = scmp.ne.s32.totalorder %s78, %s80
    %p87 = scmp.eq.s32.totalorder %s14, 1
    %p88 = por %p86, %p87
    %p89 = scmp.ne.s32.totalorder %s80, %s81
    %p90 = scmp.eq.s32.totalorder %s14, 0
    %p91 = por %p89, %p90
    %p92 = scmp.ne.s32.totalorder %s80, %s81
    %p93 = scmp.eq.s32.totalorder %s15, 1
    %p94 = por %p92, %p93
    %p96 = scmp.ne.s32.totalorder %s81, %s95
    %p97 = scmp.eq.s32.totalorder %s15, 0
    %p98 = por %p96, %p97
    %s99 = ssub.s32 %s16, %s28
    %s100 = ssub.s32 %s17, %s24
    %s101 = sor.u32 %s99, %s100
    %p102 = scmp.eq.s32.totalorder %s101, 0
    %s104 = sadd.s32 %s103, 1
    %s105 = scalar_select %p102, %s103, %s104
    %p108 = pneg %p102
    %p109 = scmp.eq.s32.totalorder %s9, 1
    %p110 = por %p108, %p109
    %p111 = scmp.ne.s32.totalorder %s103, %s106
    %p112 = scmp.eq.s32.totalorder %s9, 0
    %p113 = por %p111, %p112
    %p114 = scmp.ne.s32.totalorder %s103, %s106
    %p115 = scmp.eq.s32.totalorder %s14, 1
    %p116 = por %p114, %p115
    %p117 = scmp.ne.s32.totalorder %s106, %s107
    %p118 = scmp.eq.s32.totalorder %s14, 0
    %p119 = por %p117, %p118
    %p120 = scmp.ne.s32.totalorder %s106, %s107
    %p121 = scmp.eq.s32.totalorder %s15, 1
    %p122 = por %p120, %p121
    %p124 = scmp.ne.s32.totalorder %s107, %s123
    %p125 = scmp.eq.s32.totalorder %s15, 0
    %p126 = por %p124, %p125
    %p127 = scmp.le.s32.totalorder 1, %s9
    %p128 = scmp.lt.s32.totalorder %s9, 3
    %p129 = pnand %p127, %p128
    %p130 = pneg %p129
    // Predicated region
    $region9: #{downsampling_forward.1} parent=5 // pred_check
      _
    $region10: #{downsampling_forward.1} parent=5 // pred_check_branch
      %132 = sbr.rel (%p129) target = $region12
    $region11: #{downsampling_forward.1} parent=5 // pred_region
      %s133 = ssub.s32 %s9, 1
      // Predicated region
      $region13: #{downsampling_forward.1} parent=11 // pred_check
        %p134 = pneg %p42
      $region14: #{downsampling_forward.1} parent=11 // pred_check_branch
        %136 = sbr.rel (%p134) target = $region16
      $region15: #{downsampling_forward.1} parent=11 // pred_region
        _
      $region16: #{downsampling_forward.1} parent=11 // pred_fallthru
        _
      // Predicated region
      $region17: #{downsampling_forward.1} parent=11 // pred_check
        %p137 = pneg %p91
      $region18: #{downsampling_forward.1} parent=11 // pred_check_branch
        %139 = sbr.rel (%p137) target = $region20
      $region19: #{downsampling_forward.1} parent=11 // pred_region
        _
      $region20: #{downsampling_forward.1} parent=11 // pred_fallthru
        _
    $region12: #{downsampling_forward.1} parent=5 // pred_fallthru
      _
    %p140 = scmp.lt.s32.totalorder %s9, 2
    // Predicated region
    $region21: #{downsampling_forward.1} parent=5 // pred_check
      %p141 = pneg %p140
    $region22: #{downsampling_forward.1} parent=5 // pred_check_branch
      %143 = sbr.rel (%p141) target = $region24
    $region23: #{downsampling_forward.1} parent=5 // pred_region
      // Predicated region
      $region25: #{downsampling_forward.1} parent=23 // pred_check
        %p144 = pneg %p64
      $region26: #{downsampling_forward.1} parent=23 // pred_check_branch
        %146 = sbr.rel (%p144) target = $region28
      $region27: #{downsampling_forward.1} parent=23 // pred_region
        %p147 = scmp.lt.s32.totalorder %s16, 1
        %s148 = scalar_select %p147, %s16, 1
        %p149 = scmp.lt.s32.totalorder %s17, 0
        %s150 = scalar_select %p149, %s17, 0
        %s151 = smul.addr %s148, 216
        %s152 = sadd.s32 %s150, %s151
        %s153 = smul.addr %s152, 4
        %s154 = scalar_lea.vmem %s1, %s153
      $region28: #{downsampling_forward.1} parent=23 // pred_fallthru
        _
    $region24: #{downsampling_forward.1} parent=5 // pred_fallthru
      _
    %p155 = scmp.le.s32.totalorder 1, %s9
    %p156 = scmp.lt.s32.totalorder %s9, 3
    %p157 = pnand %p155, %p156
    %p158 = pneg %p157
    // Predicated region
    $region29: #{downsampling_forward.1} parent=5 // pred_check
      _
    $region30: #{downsampling_forward.1} parent=5 // pred_check_branch
      %160 = sbr.rel (%p157) target = $region32
    $region31: #{downsampling_forward.1} parent=5 // pred_region
      %s161 = ssub.s32 %s9, 1
      %p162 = pneg %p42
      %p163 = pneg %p39
      %p164 = scmp.lt.s32.totalorder %s18, 1
      %s165 = scalar_select %p164, %s18, 1
      %p166 = scmp.lt.s32.totalorder %s19, 0
      %s167 = scalar_select %p166, %s19, 0
      %s168 = smul.addr %s165, 216
      %s169 = sadd.s32 %s167, %s168
      %s170 = smul.addr %s169, 4
      %s171 = scalar_lea.vmem %s1, %s170
      %p172 = pneg %p70
      %p173 = pneg %p67
      %p174 = pneg %p91
      %p175 = pneg %p88
      %p176 = pneg %p119
      %p177 = pneg %p116
      %p178 = scmp.lt.s32.totalorder %s18, 1
      %s179 = scalar_select %p178, %s18, 1
      %p180 = scmp.lt.s32.totalorder %s19, 0
      %s181 = scalar_select %p180, %s19, 0
      %s182 = smul.addr %s179, 16
      %s183 = sadd.s32 %s181, %s182
      %s184 = smul.addr %s183, 8
      %s185 = scalar_lea.vmem %s3, %s184
      %p186 = scmp.lt.s32.totalorder %s18, 1
      %s187 = scalar_select %p186, %s18, 1
      %p188 = scmp.lt.s32.totalorder %s19, 0
      %s189 = scalar_select %p188, %s19, 0
      %s190 = smul.addr %s187, 216
      %s191 = sadd.s32 %s189, %s190
      %s192 = smul.addr %s191, 4
      %s193 = scalar_lea.vmem %s1, %s192
      %p194 = scmp.lt.s32.totalorder %s18, 1
      %s195 = scalar_select %p194, %s18, 1
      %p196 = scmp.lt.s32.totalorder %s19, 0
      %s197 = scalar_select %p196, %s19, 0
      %s198 = smul.addr %s195, 16
      %s199 = sadd.s32 %s197, %s198
      %s200 = smul.addr %s199, 8
      %s201 = scalar_lea.vmem %s3, %s200
      %v203 = vld [vmem:[%s0] sm:$0xff]
      %v204 = vld [vmem:[%s0 + $0x8] sm:$0xff]
      %v205 = vld [vmem:[%s0 + $0x10] sm:$0xff]
      %v206 = vld [vmem:[%s0 + $0x18] sm:$0xff]
      %v207 = vld [vmem:[%s0 + $0x20] sm:$0xff]
      %v208 = vld [vmem:[%s0 + $0x28] sm:$0xff]
      %v209 = vld [vmem:[%s0 + $0x30] sm:$0xff]
      %v210 = vld [vmem:[%s0 + $0x38] sm:$0xff]
      %v211 = vld [vmem:[%s0 + $0x40] sm:$0xff]
      %v212 = vld [vmem:[%s0 + $0x48] sm:$0xff]
      %v213 = vld [vmem:[%s0 + $0x50] sm:$0xff]
      %v214 = vld [vmem:[%s0 + $0x58] sm:$0xff]
      %v215 = vld [vmem:[%s0 + $0x60] sm:$0xff]
      %v216 = vld [vmem:[%s0 + $0x68] sm:$0xff]
      %v217 = vld [vmem:[%s0 + $0x70] sm:$0xff]
      %v218 = vld [vmem:[%s0 + $0x78] sm:$0xff]
      %v219 = vld [vmem:[%s0 + $0x80] sm:$0xff]
      %v220 = vld [vmem:[%s0 + $0x88] sm:$0xff]
      %v221 = vld [vmem:[%s0 + $0x90] sm:$0xff]
      %v222 = vld [vmem:[%s0 + $0x98] sm:$0xff]
      %v223 = vld [vmem:[%s0 + $0xa0] sm:$0xff]
      %v224 = vld [vmem:[%s0 + $0xa8] sm:$0xff]
      %v225 = vld [vmem:[%s0 + $0xb0] sm:$0xff]
      %v226 = vld [vmem:[%s0 + $0xb8] sm:$0xff]
      %v227 = vld [vmem:[%s0 + $0xc0] sm:$0xff]
      %v228 = vld [vmem:[%s0 + $0xc8] sm:$0xff]
      %v229 = vld [vmem:[%s0 + $0xd0] sm:$0xff]
      %v230 = vld [vmem:[%s0 + $0xd8] sm:$0xff]
      %v231 = vld [vmem:[%s0 + $0xe0] sm:$0xff]
      %v232 = vld [vmem:[%s0 + $0xe8] sm:$0xff]
      %v233 = vld [vmem:[%s0 + $0xf0] sm:$0xff]
      %v234 = vld [vmem:[%s0 + $0xf8] sm:$0xff]
      %v235 = vld [vmem:[%s0 + $0x100] sm:$0xff]
      %v236 = vld [vmem:[%s0 + $0x108] sm:$0xff]
      %v237 = vld [vmem:[%s0 + $0x110] sm:$0xff]
      %v238 = vld [vmem:[%s0 + $0x118] sm:$0xff]
      %v239 = vld [vmem:[%s0 + $0x120] sm:$0xff]
      %v240 = vld [vmem:[%s0 + $0x128] sm:$0xff]
      %v241 = vld [vmem:[%s0 + $0x130] sm:$0xff]
      %v242 = vld [vmem:[%s0 + $0x138] sm:$0xff]
      %v243 = vld [vmem:[%s0 + $0x140] sm:$0xff]
      %v244 = vld [vmem:[%s0 + $0x148] sm:$0xff]
      %v245 = vld [vmem:[%s0 + $0x150] sm:$0xff]
      %v246 = vld [vmem:[%s0 + $0x158] sm:$0xff]
      %v247 = vld [vmem:[%s0 + $0x160] sm:$0xff]
      %v248 = vld [vmem:[%s0 + $0x168] sm:$0xff]
      %v249 = vld [vmem:[%s0 + $0x170] sm:$0xff]
      %v250 = vld [vmem:[%s0 + $0x178] sm:$0xff]
      %v251 = vld [vmem:[%s0 + $0x180] sm:$0xff]
      %v252 = vld [vmem:[%s0 + $0x188] sm:$0xff]
      %v253 = vld [vmem:[%s0 + $0x190] sm:$0xff]
      %v254 = vld [vmem:[%s0 + $0x198] sm:$0xff]
      %v255 = vld [vmem:[%s0 + $0x1a0] sm:$0xff]
      %v256 = vld [vmem:[%s0 + $0x1a8] sm:$0xff]
      %v257 = vld [vmem:[%s0 + $0x1b0] sm:$0xff]
      %v258 = vld [vmem:[%s0 + $0x1b8] sm:$0xff]
      %v259 = vld [vmem:[%s0 + $0x1c0] sm:$0xff]
      %v260 = vld [vmem:[%s0 + $0x1c8] sm:$0xff]
      %v261 = vld [vmem:[%s0 + $0x1d0] sm:$0xff]
      %v262 = vld [vmem:[%s0 + $0x1d8] sm:$0xff]
      %v263 = vld [vmem:[%s0 + $0x1e0] sm:$0xff]
      %v264 = vld [vmem:[%s0 + $0x1e8] sm:$0xff]
      %v265 = vld [vmem:[%s0 + $0x1f0] sm:$0xff]
      %v266 = vld [vmem:[%s0 + $0x1f8] sm:$0xff]
      %v267 = vld [vmem:[%s0 + $0x200] sm:$0xff]
      %v268 = vld [vmem:[%s0 + $0x208] sm:$0xff]
      %v269 = vld [vmem:[%s0 + $0x210] sm:$0xff]
      %v270 = vld [vmem:[%s0 + $0x218] sm:$0xff]
      %v271 = vld [vmem:[%s0 + $0x220] sm:$0xff]
      %v272 = vld [vmem:[%s0 + $0x228] sm:$0xff]
      %v273 = vld [vmem:[%s0 + $0x230] sm:$0xff]
      %v274 = vld [vmem:[%s0 + $0x238] sm:$0xff]
      %v275 = vld [vmem:[%s0 + $0x240] sm:$0xff]
      %v276 = vld [vmem:[%s0 + $0x248] sm:$0xff]
      %v277 = vld [vmem:[%s0 + $0x250] sm:$0xff]
      %v278 = vld [vmem:[%s0 + $0x258] sm:$0xff]
      %v279 = vld [vmem:[%s0 + $0x260] sm:$0xff]
      %v280 = vld [vmem:[%s0 + $0x268] sm:$0xff]
      %v281 = vld [vmem:[%s0 + $0x270] sm:$0xff]
      %v282 = vld [vmem:[%s0 + $0x278] sm:$0xff]
      %v283 = vld [vmem:[%s0 + $0x280] sm:$0xff]
      %v284 = vld [vmem:[%s0 + $0x288] sm:$0xff]
      %v285 = vld [vmem:[%s0 + $0x290] sm:$0xff]
      %v286 = vld [vmem:[%s0 + $0x298] sm:$0xff]
      %v287 = vld [vmem:[%s0 + $0x2a0] sm:$0xff]
      %v288 = vld [vmem:[%s0 + $0x2a8] sm:$0xff]
      %v289 = vld [vmem:[%s0 + $0x2b0] sm:$0xff]
      %v290 = vld [vmem:[%s0 + $0x2b8] sm:$0xff]
      %v291 = vld [vmem:[%s0 + $0x2c0] sm:$0xff]
      %v292 = vld [vmem:[%s0 + $0x2c8] sm:$0xff]
      %v293 = vld [vmem:[%s0 + $0x2d0] sm:$0xff]
      %v294 = vld [vmem:[%s0 + $0x2d8] sm:$0xff]
      %v295 = vld [vmem:[%s0 + $0x2e0] sm:$0xff]
      %v296 = vld [vmem:[%s0 + $0x2e8] sm:$0xff]
      %v297 = vld [vmem:[%s0 + $0x2f0] sm:$0xff]
      %v298 = vld [vmem:[%s0 + $0x2f8] sm:$0xff]
      %v299 = vld [vmem:[%s0 + $0x300] sm:$0xff]
      %v300 = vld [vmem:[%s0 + $0x308] sm:$0xff]
      %v301 = vld [vmem:[%s0 + $0x310] sm:$0xff]
      %v302 = vld [vmem:[%s0 + $0x318] sm:$0xff]
      %v303 = vld [vmem:[%s0 + $0x320] sm:$0xff]
      %v304 = vld [vmem:[%s0 + $0x328] sm:$0xff]
      %v305 = vld [vmem:[%s0 + $0x330] sm:$0xff]
      %v306 = vld [vmem:[%s0 + $0x338] sm:$0xff]
      %v307 = vld [vmem:[%s0 + $0x340] sm:$0xff]
      %v308 = vld [vmem:[%s0 + $0x348] sm:$0xff]
      %v309 = vld [vmem:[%s0 + $0x350] sm:$0xff]
      %v310 = vld [vmem:[%s0 + $0x358] sm:$0xff]
      %v311 = vld [vmem:[%s0 + $0x360] sm:$0xff]
      %v312 = vld [vmem:[%s0 + $0x368] sm:$0xff]
      %v313 = vld [vmem:[%s0 + $0x370] sm:$0xff]
      %v314 = vld [vmem:[%s0 + $0x378] sm:$0xff]
      %v315 = vld [vmem:[%s193] sm:$0xf]
      %v316 = vld [vmem:[%s193 + $0x4] sm:$0xf]
      %v317 = vld [vmem:[%s193 + $0x8] sm:$0xf]
      %v318 = vld [vmem:[%s193 + $0xc] sm:$0xf]
      %v319 = vld [vmem:[%s193 + $0x10] sm:$0xf]
      %v320 = vld [vmem:[%s193 + $0x14] sm:$0xf]
      %v321 = vld [vmem:[%s193 + $0x18] sm:$0xf]
      %v322 = vld [vmem:[%s193 + $0x1c] sm:$0xf]
      %v323 = vld [vmem:[%s193 + $0x20] sm:$0xf]
      %v324 = vld [vmem:[%s193 + $0x24] sm:$0xf]
      %v325 = vld [vmem:[%s193 + $0x28] sm:$0xf]
      %v326 = vld [vmem:[%s193 + $0x2c] sm:$0xf]
      %v327 = vld [vmem:[%s193 + $0x30] sm:$0xf]
      %v328 = vld [vmem:[%s193 + $0x34] sm:$0xf]
      %v329 = vld [vmem:[%s193 + $0x38] sm:$0xf]
      %v330 = vld [vmem:[%s193 + $0x3c] sm:$0xf]
      %v331 = vld [vmem:[%s193 + $0x40] sm:$0xf]
      %v332 = vld [vmem:[%s193 + $0x44] sm:$0xf]
      %v333 = vld [vmem:[%s193 + $0x48] sm:$0xf]
      %v334 = vld [vmem:[%s193 + $0x4c] sm:$0xf]
      %v335 = vld [vmem:[%s193 + $0x50] sm:$0xf]
      %v336 = vld [vmem:[%s193 + $0x54] sm:$0xf]
      %v337 = vld [vmem:[%s193 + $0x58] sm:$0xf]
      %v338 = vld [vmem:[%s193 + $0x5c] sm:$0xf]
      %v339 = vld [vmem:[%s193 + $0x60] sm:$0xf]
      %v340 = vld [vmem:[%s193 + $0x64] sm:$0xf]
      %v341 = vld [vmem:[%s193 + $0x68] sm:$0xf]
      %v342 = vld [vmem:[%s193 + $0x6c] sm:$0xf]
      %v343 = vld [vmem:[%s193 + $0x70] sm:$0xf]
      %v344 = vld [vmem:[%s193 + $0x74] sm:$0xf]
      %v345 = vld [vmem:[%s193 + $0x78] sm:$0xf]
      %v346 = vld [vmem:[%s193 + $0x7c] sm:$0xf]
      %v347 = vld [vmem:[%s193 + $0x80] sm:$0xf]
      %v348 = vld [vmem:[%s193 + $0x84] sm:$0xf]
      %v349 = vld [vmem:[%s193 + $0x88] sm:$0xf]
      %v350 = vld [vmem:[%s193 + $0x8c] sm:$0xf]
      %v351 = vld [vmem:[%s193 + $0x90] sm:$0xf]
      %v352 = vld [vmem:[%s193 + $0x94] sm:$0xf]
      %v353 = vld [vmem:[%s193 + $0x98] sm:$0xf]
      %v354 = vld [vmem:[%s193 + $0x9c] sm:$0xf]
      %v355 = vld [vmem:[%s193 + $0xa0] sm:$0xf]
      %v356 = vld [vmem:[%s193 + $0xa4] sm:$0xf]
      %v357 = vld [vmem:[%s193 + $0xa8] sm:$0xf]
      %v358 = vld [vmem:[%s193 + $0xac] sm:$0xf]
      %v359 = vld [vmem:[%s193 + $0xb0] sm:$0xf]
      %v360 = vld [vmem:[%s193 + $0xb4] sm:$0xf]
      %v361 = vld [vmem:[%s193 + $0xb8] sm:$0xf]
      %v362 = vld [vmem:[%s193 + $0xbc] sm:$0xf]
      %v363 = vld [vmem:[%s193 + $0xc0] sm:$0xf]
      %v364 = vld [vmem:[%s193 + $0xc4] sm:$0xf]
      %v365 = vld [vmem:[%s193 + $0xc8] sm:$0xf]
      %v366 = vld [vmem:[%s193 + $0xcc] sm:$0xf]
      %v367 = vld [vmem:[%s193 + $0xd0] sm:$0xf]
      %v368 = vld [vmem:[%s193 + $0xd4] sm:$0xf]
      %v369 = vld [vmem:[%s193 + $0xd8] sm:$0xf]
      %v370 = vld [vmem:[%s193 + $0xdc] sm:$0xf]
      %v371 = vld [vmem:[%s193 + $0xe0] sm:$0xf]
      %v372 = vld [vmem:[%s193 + $0xe4] sm:$0xf]
      %v373 = vld [vmem:[%s193 + $0xe8] sm:$0xf]
      %v374 = vld [vmem:[%s193 + $0xec] sm:$0xf]
      %v375 = vld [vmem:[%s193 + $0xf0] sm:$0xf]
      %v376 = vld [vmem:[%s193 + $0xf4] sm:$0xf]
      %v377 = vld [vmem:[%s193 + $0xf8] sm:$0xf]
      %v378 = vld [vmem:[%s193 + $0xfc] sm:$0xf]
      %v379 = vld [vmem:[%s193 + $0x100] sm:$0xf]
      %v380 = vld [vmem:[%s193 + $0x104] sm:$0xf]
      %v381 = vld [vmem:[%s193 + $0x108] sm:$0xf]
      %v382 = vld [vmem:[%s193 + $0x10c] sm:$0xf]
      %v383 = vld [vmem:[%s193 + $0x110] sm:$0xf]
      %v384 = vld [vmem:[%s193 + $0x114] sm:$0xf]
      %v385 = vld [vmem:[%s193 + $0x118] sm:$0xf]
      %v386 = vld [vmem:[%s193 + $0x11c] sm:$0xf]
      %v387 = vld [vmem:[%s193 + $0x120] sm:$0xf]
      %v388 = vld [vmem:[%s193 + $0x124] sm:$0xf]
      %v389 = vld [vmem:[%s193 + $0x128] sm:$0xf]
      %v390 = vld [vmem:[%s193 + $0x12c] sm:$0xf]
      %v391 = vld [vmem:[%s193 + $0x130] sm:$0xf]
      %v392 = vld [vmem:[%s193 + $0x134] sm:$0xf]
      %v393 = vld [vmem:[%s193 + $0x138] sm:$0xf]
      %v394 = vld [vmem:[%s193 + $0x13c] sm:$0xf]
      %v395 = vld [vmem:[%s193 + $0x140] sm:$0xf]
      %v396 = vld [vmem:[%s193 + $0x144] sm:$0xf]
      %v397 = vld [vmem:[%s193 + $0x148] sm:$0xf]
      %v398 = vld [vmem:[%s193 + $0x14c] sm:$0xf]
      %v399 = vld [vmem:[%s193 + $0x150] sm:$0xf]
      %v400 = vld [vmem:[%s193 + $0x154] sm:$0xf]
      %v401 = vld [vmem:[%s193 + $0x158] sm:$0xf]
      %v402 = vld [vmem:[%s193 + $0x15c] sm:$0xf]
      %v403 = vld [vmem:[%s193 + $0x160] sm:$0xf]
      %v404 = vld [vmem:[%s193 + $0x164] sm:$0xf]
      %v405 = vld [vmem:[%s193 + $0x168] sm:$0xf]
      %v406 = vld [vmem:[%s193 + $0x16c] sm:$0xf]
      %v407 = vld [vmem:[%s193 + $0x170] sm:$0xf]
      %v408 = vld [vmem:[%s193 + $0x174] sm:$0xf]
      %v409 = vld [vmem:[%s193 + $0x178] sm:$0xf]
      %v410 = vld [vmem:[%s193 + $0x17c] sm:$0xf]
      %v411 = vld [vmem:[%s193 + $0x180] sm:$0xf]
      %v412 = vld [vmem:[%s193 + $0x184] sm:$0xf]
      %v413 = vld [vmem:[%s193 + $0x188] sm:$0xf]
      %v414 = vld [vmem:[%s193 + $0x18c] sm:$0xf]
      %v415 = vld [vmem:[%s193 + $0x190] sm:$0xf]
      %v416 = vld [vmem:[%s193 + $0x194] sm:$0xf]
      %v417 = vld [vmem:[%s193 + $0x198] sm:$0xf]
      %v418 = vld [vmem:[%s193 + $0x19c] sm:$0xf]
      %v419 = vld [vmem:[%s193 + $0x1a0] sm:$0xf]
      %v420 = vld [vmem:[%s193 + $0x1a4] sm:$0xf]
      %v421 = vld [vmem:[%s193 + $0x1a8] sm:$0xf]
      %v422 = vld [vmem:[%s193 + $0x1ac] sm:$0xf]
      %v423 = vld [vmem:[%s193 + $0x1b0] sm:$0xf]
      %v424 = vld [vmem:[%s193 + $0x1b4] sm:$0xf]
      %v425 = vld [vmem:[%s193 + $0x1b8] sm:$0xf]
      %v426 = vld [vmem:[%s193 + $0x1bc] sm:$0xf]
      %v427 = vld [vmem:[%s193 + $0x1c0] sm:$0xf]
      %v428 = vld [vmem:[%s193 + $0x1c4] sm:$0xf]
      %v429 = vld [vmem:[%s193 + $0x1c8] sm:$0xf]
      %v430 = vld [vmem:[%s193 + $0x1cc] sm:$0xf]
      %v431 = vld [vmem:[%s193 + $0x1d0] sm:$0xf]
      %v432 = vld [vmem:[%s193 + $0x1d4] sm:$0xf]
      %v433 = vld [vmem:[%s193 + $0x1d8] sm:$0xf]
      %v434 = vld [vmem:[%s193 + $0x1dc] sm:$0xf]
      %v435 = vld [vmem:[%s193 + $0x1e0] sm:$0xf]
      %v436 = vld [vmem:[%s193 + $0x1e4] sm:$0xf]
      %v437 = vld [vmem:[%s193 + $0x1e8] sm:$0xf]
      %v438 = vld [vmem:[%s193 + $0x1ec] sm:$0xf]
      %v439 = vld [vmem:[%s193 + $0x1f0] sm:$0xf]
      %v440 = vld [vmem:[%s193 + $0x1f4] sm:$0xf]
      %v441 = vld [vmem:[%s193 + $0x1f8] sm:$0xf]
      %v442 = vld [vmem:[%s193 + $0x1fc] sm:$0xf]
      %v443 = vld [vmem:[%s193 + $0x200] sm:$0xf]
      %v444 = vld [vmem:[%s193 + $0x204] sm:$0xf]
      %v445 = vld [vmem:[%s193 + $0x208] sm:$0xf]
      %v446 = vld [vmem:[%s193 + $0x20c] sm:$0xf]
      %v447 = vld [vmem:[%s193 + $0x210] sm:$0xf]
      %v448 = vld [vmem:[%s193 + $0x214] sm:$0xf]
      %v449 = vld [vmem:[%s193 + $0x218] sm:$0xf]
      %v450 = vld [vmem:[%s193 + $0x21c] sm:$0xf]
      %v451 = vld [vmem:[%s193 + $0x220] sm:$0xf]
      %v452 = vld [vmem:[%s193 + $0x224] sm:$0xf]
      %v453 = vld [vmem:[%s193 + $0x228] sm:$0xf]
      %v454 = vld [vmem:[%s193 + $0x22c] sm:$0xf]
      %v455 = vld [vmem:[%s193 + $0x230] sm:$0xf]
      %v456 = vld [vmem:[%s193 + $0x234] sm:$0xf]
      %v457 = vld [vmem:[%s193 + $0x238] sm:$0xf]
      %v458 = vld [vmem:[%s193 + $0x23c] sm:$0xf]
      %v459 = vld [vmem:[%s193 + $0x240] sm:$0xf]
      %v460 = vld [vmem:[%s193 + $0x244] sm:$0xf]
      %v461 = vld [vmem:[%s193 + $0x248] sm:$0xf]
      %v462 = vld [vmem:[%s193 + $0x24c] sm:$0xf]
      %v463 = vld [vmem:[%s193 + $0x250] sm:$0xf]
      %v464 = vld [vmem:[%s193 + $0x254] sm:$0xf]
      %v465 = vld [vmem:[%s193 + $0x258] sm:$0xf]
      %v466 = vld [vmem:[%s193 + $0x25c] sm:$0xf]
      %v467 = vld [vmem:[%s193 + $0x260] sm:$0xf]
      %v468 = vld [vmem:[%s193 + $0x264] sm:$0xf]
      %v469 = vld [vmem:[%s193 + $0x268] sm:$0xf]
      %v470 = vld [vmem:[%s193 + $0x26c] sm:$0xf]
      %v471 = vld [vmem:[%s193 + $0x270] sm:$0xf]
      %v472 = vld [vmem:[%s193 + $0x274] sm:$0xf]
      %v473 = vld [vmem:[%s193 + $0x278] sm:$0xf]
      %v474 = vld [vmem:[%s193 + $0x27c] sm:$0xf]
      %v475 = vld [vmem:[%s193 + $0x280] sm:$0xf]
      %v476 = vld [vmem:[%s193 + $0x284] sm:$0xf]
      %v477 = vld [vmem:[%s193 + $0x288] sm:$0xf]
      %v478 = vld [vmem:[%s193 + $0x28c] sm:$0xf]
      %v479 = vld [vmem:[%s193 + $0x290] sm:$0xf]
      %v480 = vld [vmem:[%s193 + $0x294] sm:$0xf]
      %v481 = vld [vmem:[%s193 + $0x298] sm:$0xf]
      %v482 = vld [vmem:[%s193 + $0x29c] sm:$0xf]
      %v483 = vld [vmem:[%s193 + $0x2a0] sm:$0xf]
      %v484 = vld [vmem:[%s193 + $0x2a4] sm:$0xf]
      %v485 = vld [vmem:[%s193 + $0x2a8] sm:$0xf]
      %v486 = vld [vmem:[%s193 + $0x2ac] sm:$0xf]
      %v487 = vld [vmem:[%s193 + $0x2b0] sm:$0xf]
      %v488 = vld [vmem:[%s193 + $0x2b4] sm:$0xf]
      %v489 = vld [vmem:[%s193 + $0x2b8] sm:$0xf]
      %v490 = vld [vmem:[%s193 + $0x2bc] sm:$0xf]
      %v491 = vld [vmem:[%s193 + $0x2c0] sm:$0xf]
      %v492 = vld [vmem:[%s193 + $0x2c4] sm:$0xf]
      %v493 = vld [vmem:[%s193 + $0x2c8] sm:$0xf]
      %v494 = vld [vmem:[%s193 + $0x2cc] sm:$0xf]
      %v495 = vld [vmem:[%s193 + $0x2d0] sm:$0xf]
      %v496 = vld [vmem:[%s193 + $0x2d4] sm:$0xf]
      %v497 = vld [vmem:[%s193 + $0x2d8] sm:$0xf]
      %v498 = vld [vmem:[%s193 + $0x2dc] sm:$0xf]
      %v499 = vld [vmem:[%s193 + $0x2e0] sm:$0xf]
      %v500 = vld [vmem:[%s193 + $0x2e4] sm:$0xf]
      %v501 = vld [vmem:[%s193 + $0x2e8] sm:$0xf]
      %v502 = vld [vmem:[%s193 + $0x2ec] sm:$0xf]
      %v503 = vld [vmem:[%s193 + $0x2f0] sm:$0xf]
      %v504 = vld [vmem:[%s193 + $0x2f4] sm:$0xf]
      %v505 = vld [vmem:[%s193 + $0x2f8] sm:$0xf]
      %v506 = vld [vmem:[%s193 + $0x2fc] sm:$0xf]
      %v507 = vld [vmem:[%s193 + $0x300] sm:$0xf]
      %v508 = vld [vmem:[%s193 + $0x304] sm:$0xf]
      %v509 = vld [vmem:[%s193 + $0x308] sm:$0xf]
      %v510 = vld [vmem:[%s193 + $0x30c] sm:$0xf]
      %v511 = vld [vmem:[%s193 + $0x310] sm:$0xf]
      %v512 = vld [vmem:[%s193 + $0x314] sm:$0xf]
      %v513 = vld [vmem:[%s193 + $0x318] sm:$0xf]
      %v514 = vld [vmem:[%s193 + $0x31c] sm:$0xf]
      %v515 = vld [vmem:[%s193 + $0x320] sm:$0xf]
      %v516 = vld [vmem:[%s193 + $0x324] sm:$0xf]
      %v517 = vld [vmem:[%s193 + $0x328] sm:$0xf]
      %v518 = vld [vmem:[%s193 + $0x32c] sm:$0xf]
      %v519 = vld [vmem:[%s193 + $0x330] sm:$0xf]
      %v520 = vld [vmem:[%s193 + $0x334] sm:$0xf]
      %v521 = vld [vmem:[%s193 + $0x338] sm:$0xf]
      %v522 = vld [vmem:[%s193 + $0x33c] sm:$0xf]
      %v523 = vld [vmem:[%s193 + $0x340] sm:$0xf]
      %v524 = vld [vmem:[%s193 + $0x344] sm:$0xf]
      %v525 = vld [vmem:[%s193 + $0x348] sm:$0xf]
      %v526 = vld [vmem:[%s193 + $0x34c] sm:$0xf]
      %v527 = vld [vmem:[%s193 + $0x350] sm:$0xf]
      %v528 = vld [vmem:[%s193 + $0x354] sm:$0xf]
      %v529 = vld [vmem:[%s193 + $0x358] sm:$0xf]
      %v530 = vld [vmem:[%s193 + $0x35c] sm:$0xf]
      %v531 = vld [vmem:[%s2] sm:$0xff]
      %v532 = vld [vmem:[%s2 + $0x8] sm:$0xff]
      %v533 = vld [vmem:[%s2 + $0x10] sm:$0xff]
      %v534 = vld [vmem:[%s2 + $0x18] sm:$0xff]
      %v535 = vld [vmem:[%s2 + $0x20] sm:$0xff]
      %v536 = vld [vmem:[%s2 + $0x28] sm:$0xff]
      %v537 = vld [vmem:[%s2 + $0x30] sm:$0xff]
      %v538 = vld [vmem:[%s2 + $0x38] sm:$0xff]
      %v539 = vld [vmem:[%s2 + $0x40] sm:$0xff]
      %v540 = vld [vmem:[%s2 + $0x48] sm:$0xff]
      %v541 = vld [vmem:[%s2 + $0x50] sm:$0xff]
      %v542 = vld [vmem:[%s2 + $0x58] sm:$0xff]
      %v543 = vld [vmem:[%s2 + $0x60] sm:$0xff]
      %v544 = vld [vmem:[%s2 + $0x68] sm:$0xff]
      %v545 = vld [vmem:[%s2 + $0x70] sm:$0xff]
      %v546 = vld [vmem:[%s2 + $0x78] sm:$0xff]
      %548 = vset.pattern.permute.xlu0 0
      %549 = vperm.xlu0 %548, %v531
      %v550 = vpop.permute.xlu0 %549
      %553 = vset.pattern.permute.xlu0 0
      %554 = vperm.xlu0 %553, %v532
      %v555 = vpop.permute.xlu0 %554
      %558 = vset.pattern.permute.xlu0 0
      %559 = vperm.xlu0 %558, %v533
      %v560 = vpop.permute.xlu0 %559
      %563 = vset.pattern.permute.xlu0 0
      %564 = vperm.xlu0 %563, %v534
      %v565 = vpop.permute.xlu0 %564
      %568 = vset.pattern.permute.xlu0 0
      %569 = vperm.xlu0 %568, %v535
      %v570 = vpop.permute.xlu0 %569
      %573 = vset.pattern.permute.xlu0 0
      %574 = vperm.xlu0 %573, %v536
      %v575 = vpop.permute.xlu0 %574
      %578 = vset.pattern.permute.xlu0 0
      %579 = vperm.xlu0 %578, %v537
      %v580 = vpop.permute.xlu0 %579
      %583 = vset.pattern.permute.xlu0 0
      %584 = vperm.xlu0 %583, %v538
      %v585 = vpop.permute.xlu0 %584
      %588 = vset.pattern.permute.xlu0 0
      %589 = vperm.xlu0 %588, %v539
      %v590 = vpop.permute.xlu0 %589
      %593 = vset.pattern.permute.xlu0 0
      %594 = vperm.xlu0 %593, %v540
      %v595 = vpop.permute.xlu0 %594
      %598 = vset.pattern.permute.xlu0 0
      %599 = vperm.xlu0 %598, %v541
      %v600 = vpop.permute.xlu0 %599
      %603 = vset.pattern.permute.xlu0 0
      %604 = vperm.xlu0 %603, %v542
      %v605 = vpop.permute.xlu0 %604
      %608 = vset.pattern.permute.xlu0 0
      %609 = vperm.xlu0 %608, %v543
      %v610 = vpop.permute.xlu0 %609
      %613 = vset.pattern.permute.xlu0 0
      %614 = vperm.xlu0 %613, %v544
      %v615 = vpop.permute.xlu0 %614
      %618 = vset.pattern.permute.xlu0 0
      %619 = vperm.xlu0 %618, %v545
      %v620 = vpop.permute.xlu0 %619
      %623 = vset.pattern.permute.xlu0 0
      %624 = vperm.xlu0 %623, %v546
      %v625 = vpop.permute.xlu0 %624
      %v739 = vunpack.c.l.b16 %v203
      %v740 = vunpack.c.h.b16 %v203
      %v741 = vunpack.c.l.b16 %v204
      %v742 = vunpack.c.h.b16 %v204
      %v743 = vunpack.c.l.b16 %v205
      %v744 = vunpack.c.h.b16 %v205
      %v745 = vunpack.c.l.b16 %v206
      %v746 = vunpack.c.h.b16 %v206
      %v747 = vunpack.c.l.b16 %v207
      %v748 = vunpack.c.h.b16 %v207
      %v749 = vunpack.c.l.b16 %v208
      %v750 = vunpack.c.h.b16 %v208
      %v751 = vunpack.c.l.b16 %v209
      %v752 = vunpack.c.h.b16 %v209
      %v753 = vunpack.c.l.b16 %v210
      %v754 = vunpack.c.h.b16 %v210
      %v755 = vunpack.c.l.b16 %v211
      %v756 = vunpack.c.h.b16 %v211
      %v757 = vunpack.c.l.b16 %v212
      %v758 = vunpack.c.h.b16 %v212
      %v759 = vunpack.c.l.b16 %v213
      %v760 = vunpack.c.h.b16 %v213
      %v761 = vunpack.c.l.b16 %v214
      %v762 = vunpack.c.h.b16 %v214
      %v763 = vunpack.c.l.b16 %v215
      %v764 = vunpack.c.h.b16 %v215
      %v765 = vunpack.c.l.b16 %v216
      %v766 = vunpack.c.h.b16 %v216
      %v767 = vunpack.c.l.b16 %v217
      %v768 = vunpack.c.h.b16 %v217
      %v769 = vunpack.c.l.b16 %v218
      %v770 = vunpack.c.h.b16 %v218
      %v771 = vunpack.c.l.b16 %v219
      %v772 = vunpack.c.h.b16 %v219
      %v773 = vunpack.c.l.b16 %v220
      %v774 = vunpack.c.h.b16 %v220
      %v775 = vunpack.c.l.b16 %v221
      %v776 = vunpack.c.h.b16 %v221
      %v777 = vunpack.c.l.b16 %v222
      %v778 = vunpack.c.h.b16 %v222
      %v779 = vunpack.c.l.b16 %v223
      %v780 = vunpack.c.h.b16 %v223
      %v781 = vunpack.c.l.b16 %v224
      %v782 = vunpack.c.h.b16 %v224
      %v783 = vunpack.c.l.b16 %v225
      %v784 = vunpack.c.h.b16 %v225
      %v785 = vunpack.c.l.b16 %v226
      %v786 = vunpack.c.h.b16 %v226
      %v787 = vunpack.c.l.b16 %v227
      %v788 = vunpack.c.h.b16 %v227
      %v789 = vunpack.c.l.b16 %v228
      %v790 = vunpack.c.h.b16 %v228
      %v791 = vunpack.c.l.b16 %v229
      %v792 = vunpack.c.h.b16 %v229
      %v793 = vunpack.c.l.b16 %v230
      %v794 = vunpack.c.h.b16 %v230
      %v795 = vunpack.c.l.b16 %v231
      %v796 = vunpack.c.h.b16 %v231
      %v797 = vunpack.c.l.b16 %v232
      %v798 = vunpack.c.h.b16 %v232
      %v799 = vunpack.c.l.b16 %v233
      %v800 = vunpack.c.h.b16 %v233
      %v801 = vunpack.c.l.b16 %v234
      %v802 = vunpack.c.h.b16 %v234
      %v803 = vunpack.c.l.b16 %v235
      %v804 = vunpack.c.h.b16 %v235
      %v805 = vunpack.c.l.b16 %v236
      %v806 = vunpack.c.h.b16 %v236
      %v807 = vunpack.c.l.b16 %v237
      %v808 = vunpack.c.h.b16 %v237
      %v809 = vunpack.c.l.b16 %v238
      %v810 = vunpack.c.h.b16 %v238
      %v811 = vunpack.c.l.b16 %v239
      %v812 = vunpack.c.h.b16 %v239
      %v813 = vunpack.c.l.b16 %v240
      %v814 = vunpack.c.h.b16 %v240
      %v815 = vunpack.c.l.b16 %v241
      %v816 = vunpack.c.h.b16 %v241
      %v817 = vunpack.c.l.b16 %v242
      %v818 = vunpack.c.h.b16 %v242
      %v819 = vunpack.c.l.b16 %v243
      %v820 = vunpack.c.h.b16 %v243
      %v821 = vunpack.c.l.b16 %v244
      %v822 = vunpack.c.h.b16 %v244
      %v823 = vunpack.c.l.b16 %v245
      %v824 = vunpack.c.h.b16 %v245
      %v825 = vunpack.c.l.b16 %v246
      %v826 = vunpack.c.h.b16 %v246
      %v827 = vunpack.c.l.b16 %v247
      %v828 = vunpack.c.h.b16 %v247
      %v829 = vunpack.c.l.b16 %v248
      %v830 = vunpack.c.h.b16 %v248
      %v831 = vunpack.c.l.b16 %v249
      %v832 = vunpack.c.h.b16 %v249
      %v833 = vunpack.c.l.b16 %v250
      %v834 = vunpack.c.h.b16 %v250
      %v835 = vunpack.c.l.b16 %v251
      %v836 = vunpack.c.h.b16 %v251
      %v837 = vunpack.c.l.b16 %v252
      %v838 = vunpack.c.h.b16 %v252
      %v839 = vunpack.c.l.b16 %v253
      %v840 = vunpack.c.h.b16 %v253
      %v841 = vunpack.c.l.b16 %v254
      %v842 = vunpack.c.h.b16 %v254
      %v843 = vunpack.c.l.b16 %v255
      %v844 = vunpack.c.h.b16 %v255
      %v845 = vunpack.c.l.b16 %v256
      %v846 = vunpack.c.h.b16 %v256
      %v847 = vunpack.c.l.b16 %v257
      %v848 = vunpack.c.h.b16 %v257
      %v849 = vunpack.c.l.b16 %v258
      %v850 = vunpack.c.h.b16 %v258
      %v851 = vunpack.c.l.b16 %v259
      %v852 = vunpack.c.h.b16 %v259
      %v853 = vunpack.c.l.b16 %v260
      %v854 = vunpack.c.h.b16 %v260
      %v855 = vunpack.c.l.b16 %v261
      %v856 = vunpack.c.h.b16 %v261
      %v857 = vunpack.c.l.b16 %v262
      %v858 = vunpack.c.h.b16 %v262
      %v859 = vunpack.c.l.b16 %v263
      %v860 = vunpack.c.h.b16 %v263
      %v861 = vunpack.c.l.b16 %v264
      %v862 = vunpack.c.h.b16 %v264
      %v863 = vunpack.c.l.b16 %v265
      %v864 = vunpack.c.h.b16 %v265
      %v865 = vunpack.c.l.b16 %v266
      %v866 = vunpack.c.h.b16 %v266
      %v867 = vunpack.c.l.b16 %v267
      %v868 = vunpack.c.h.b16 %v267
      %v869 = vunpack.c.l.b16 %v268
      %v870 = vunpack.c.h.b16 %v268
      %v871 = vunpack.c.l.b16 %v269
      %v872 = vunpack.c.h.b16 %v269
      %v873 = vunpack.c.l.b16 %v270
      %v874 = vunpack.c.h.b16 %v270
      %v875 = vunpack.c.l.b16 %v271
      %v876 = vunpack.c.h.b16 %v271
      %v877 = vunpack.c.l.b16 %v272
      %v878 = vunpack.c.h.b16 %v272
      %v879 = vunpack.c.l.b16 %v273
      %v880 = vunpack.c.h.b16 %v273
      %v881 = vunpack.c.l.b16 %v274
      %v882 = vunpack.c.h.b16 %v274
      %v883 = vunpack.c.l.b16 %v275
      %v884 = vunpack.c.h.b16 %v275
      %v885 = vunpack.c.l.b16 %v276
      %v886 = vunpack.c.h.b16 %v276
      %v887 = vunpack.c.l.b16 %v277
      %v888 = vunpack.c.h.b16 %v277
      %v889 = vunpack.c.l.b16 %v278
      %v890 = vunpack.c.h.b16 %v278
      %v891 = vunpack.c.l.b16 %v279
      %v892 = vunpack.c.h.b16 %v279
      %v893 = vunpack.c.l.b16 %v280
      %v894 = vunpack.c.h.b16 %v280
      %v895 = vunpack.c.l.b16 %v281
      %v896 = vunpack.c.h.b16 %v281
      %v897 = vunpack.c.l.b16 %v282
      %v898 = vunpack.c.h.b16 %v282
      %v899 = vunpack.c.l.b16 %v283
      %v900 = vunpack.c.h.b16 %v283
      %v901 = vunpack.c.l.b16 %v284
      %v902 = vunpack.c.h.b16 %v284
      %v903 = vunpack.c.l.b16 %v285
      %v904 = vunpack.c.h.b16 %v285
      %v905 = vunpack.c.l.b16 %v286
      %v906 = vunpack.c.h.b16 %v286
      %v907 = vunpack.c.l.b16 %v287
      %v908 = vunpack.c.h.b16 %v287
      %v909 = vunpack.c.l.b16 %v288
      %v910 = vunpack.c.h.b16 %v288
      %v911 = vunpack.c.l.b16 %v289
      %v912 = vunpack.c.h.b16 %v289
      %v913 = vunpack.c.l.b16 %v290
      %v914 = vunpack.c.h.b16 %v290
      %v915 = vunpack.c.l.b16 %v291
      %v916 = vunpack.c.h.b16 %v291
      %v917 = vunpack.c.l.b16 %v292
      %v918 = vunpack.c.h.b16 %v292
      %v919 = vunpack.c.l.b16 %v293
      %v920 = vunpack.c.h.b16 %v293
      %v921 = vunpack.c.l.b16 %v294
      %v922 = vunpack.c.h.b16 %v294
      %v923 = vunpack.c.l.b16 %v295
      %v924 = vunpack.c.h.b16 %v295
      %v925 = vunpack.c.l.b16 %v296
      %v926 = vunpack.c.h.b16 %v296
      %v927 = vunpack.c.l.b16 %v297
      %v928 = vunpack.c.h.b16 %v297
      %v929 = vunpack.c.l.b16 %v298
      %v930 = vunpack.c.h.b16 %v298
      %v931 = vunpack.c.l.b16 %v299
      %v932 = vunpack.c.h.b16 %v299
      %v933 = vunpack.c.l.b16 %v300
      %v934 = vunpack.c.h.b16 %v300
      %v935 = vunpack.c.l.b16 %v301
      %v936 = vunpack.c.h.b16 %v301
      %v937 = vunpack.c.l.b16 %v302
      %v938 = vunpack.c.h.b16 %v302
      %v939 = vunpack.c.l.b16 %v303
      %v940 = vunpack.c.h.b16 %v303
      %v941 = vunpack.c.l.b16 %v304
      %v942 = vunpack.c.h.b16 %v304
      %v943 = vunpack.c.l.b16 %v305
      %v944 = vunpack.c.h.b16 %v305
      %v945 = vunpack.c.l.b16 %v306
      %v946 = vunpack.c.h.b16 %v306
      %v947 = vunpack.c.l.b16 %v307
      %v948 = vunpack.c.h.b16 %v307
      %v949 = vunpack.c.l.b16 %v308
      %v950 = vunpack.c.h.b16 %v308
      %v951 = vunpack.c.l.b16 %v309
      %v952 = vunpack.c.h.b16 %v309
      %v953 = vunpack.c.l.b16 %v310
      %v954 = vunpack.c.h.b16 %v310
      %v955 = vunpack.c.l.b16 %v311
      %v956 = vunpack.c.h.b16 %v311
      %v957 = vunpack.c.l.b16 %v312
      %v958 = vunpack.c.h.b16 %v312
      %v959 = vunpack.c.l.b16 %v313
      %v960 = vunpack.c.h.b16 %v313
      %v961 = vunpack.c.l.b16 %v314
      %v962 = vunpack.c.h.b16 %v314
      %v963 = vpack.c.b16 %v753, %v739
      %v964 = vpack.c.b16 %v754, %v740
      %v965 = vpack.c.b16 %v755, %v741
      %v966 = vpack.c.b16 %v756, %v742
      %v967 = vpack.c.b16 %v757, %v743
      %v968 = vpack.c.b16 %v758, %v744
      %v969 = vpack.c.b16 %v759, %v745
      %v970 = vpack.c.b16 %v760, %v746
      %v971 = vpack.c.b16 %v761, %v747
      %v972 = vpack.c.b16 %v762, %v748
      %v973 = vpack.c.b16 %v763, %v749
      %v974 = vpack.c.b16 %v764, %v750
      %v975 = vpack.c.b16 %v765, %v751
      %v976 = vpack.c.b16 %v766, %v752
      %v977 = vpack.c.b16 %v781, %v767
      %v978 = vpack.c.b16 %v782, %v768
      %v979 = vpack.c.b16 %v783, %v769
      %v980 = vpack.c.b16 %v784, %v770
      %v981 = vpack.c.b16 %v785, %v771
      %v982 = vpack.c.b16 %v786, %v772
      %v983 = vpack.c.b16 %v787, %v773
      %v984 = vpack.c.b16 %v788, %v774
      %v985 = vpack.c.b16 %v789, %v775
      %v986 = vpack.c.b16 %v790, %v776
      %v987 = vpack.c.b16 %v791, %v777
      %v988 = vpack.c.b16 %v792, %v778
      %v989 = vpack.c.b16 %v793, %v779
      %v990 = vpack.c.b16 %v794, %v780
      %v991 = vpack.c.b16 %v809, %v795
      %v992 = vpack.c.b16 %v810, %v796
      %v993 = vpack.c.b16 %v811, %v797
      %v994 = vpack.c.b16 %v812, %v798
      %v995 = vpack.c.b16 %v813, %v799
      %v996 = vpack.c.b16 %v814, %v800
      %v997 = vpack.c.b16 %v815, %v801
      %v998 = vpack.c.b16 %v816, %v802
      %v999 = vpack.c.b16 %v817, %v803
      %v1000 = vpack.c.b16 %v818, %v804
      %v1001 = vpack.c.b16 %v819, %v805
      %v1002 = vpack.c.b16 %v820, %v806
      %v1003 = vpack.c.b16 %v821, %v807
      %v1004 = vpack.c.b16 %v822, %v808
      %v1005 = vpack.c.b16 %v837, %v823
      %v1006 = vpack.c.b16 %v838, %v824
      %v1007 = vpack.c.b16 %v839, %v825
      %v1008 = vpack.c.b16 %v840, %v826
      %v1009 = vpack.c.b16 %v841, %v827
      %v1010 = vpack.c.b16 %v842, %v828
      %v1011 = vpack.c.b16 %v843, %v829
      %v1012 = vpack.c.b16 %v844, %v830
      %v1013 = vpack.c.b16 %v845, %v831
      %v1014 = vpack.c.b16 %v846, %v832
      %v1015 = vpack.c.b16 %v847, %v833
      %v1016 = vpack.c.b16 %v848, %v834
      %v1017 = vpack.c.b16 %v849, %v835
      %v1018 = vpack.c.b16 %v850, %v836
      %v1019 = vpack.c.b16 %v865, %v851
      %v1020 = vpack.c.b16 %v866, %v852
      %v1021 = vpack.c.b16 %v867, %v853
      %v1022 = vpack.c.b16 %v868, %v854
      %v1023 = vpack.c.b16 %v869, %v855
      %v1024 = vpack.c.b16 %v870, %v856
      %v1025 = vpack.c.b16 %v871, %v857
      %v1026 = vpack.c.b16 %v872, %v858
      %v1027 = vpack.c.b16 %v873, %v859
      %v1028 = vpack.c.b16 %v874, %v860
      %v1029 = vpack.c.b16 %v875, %v861
      %v1030 = vpack.c.b16 %v876, %v862
      %v1031 = vpack.c.b16 %v877, %v863
      %v1032 = vpack.c.b16 %v878, %v864
      %v1033 = vpack.c.b16 %v893, %v879
      %v1034 = vpack.c.b16 %v894, %v880
      %v1035 = vpack.c.b16 %v895, %v881
      %v1036 = vpack.c.b16 %v896, %v882
      %v1037 = vpack.c.b16 %v897, %v883
      %v1038 = vpack.c.b16 %v898, %v884
      %v1039 = vpack.c.b16 %v899, %v885
      %v1040 = vpack.c.b16 %v900, %v886
      %v1041 = vpack.c.b16 %v901, %v887
      %v1042 = vpack.c.b16 %v902, %v888
      %v1043 = vpack.c.b16 %v903, %v889
      %v1044 = vpack.c.b16 %v904, %v890
      %v1045 = vpack.c.b16 %v905, %v891
      %v1046 = vpack.c.b16 %v906, %v892
      %v1047 = vpack.c.b16 %v921, %v907
      %v1048 = vpack.c.b16 %v922, %v908
      %v1049 = vpack.c.b16 %v923, %v909
      %v1050 = vpack.c.b16 %v924, %v910
      %v1051 = vpack.c.b16 %v925, %v911
      %v1052 = vpack.c.b16 %v926, %v912
      %v1053 = vpack.c.b16 %v927, %v913
      %v1054 = vpack.c.b16 %v928, %v914
      %v1055 = vpack.c.b16 %v929, %v915
      %v1056 = vpack.c.b16 %v930, %v916
      %v1057 = vpack.c.b16 %v931, %v917
      %v1058 = vpack.c.b16 %v932, %v918
      %v1059 = vpack.c.b16 %v933, %v919
      %v1060 = vpack.c.b16 %v934, %v920
      %v1061 = vpack.c.b16 %v949, %v935
      %v1062 = vpack.c.b16 %v950, %v936
      %v1063 = vpack.c.b16 %v951, %v937
      %v1064 = vpack.c.b16 %v952, %v938
      %v1065 = vpack.c.b16 %v953, %v939
      %v1066 = vpack.c.b16 %v954, %v940
      %v1067 = vpack.c.b16 %v955, %v941
      %v1068 = vpack.c.b16 %v956, %v942
      %v1069 = vpack.c.b16 %v957, %v943
      %v1070 = vpack.c.b16 %v958, %v944
      %v1071 = vpack.c.b16 %v959, %v945
      %v1072 = vpack.c.b16 %v960, %v946
      %v1073 = vpack.c.b16 %v961, %v947
      %v1074 = vpack.c.b16 %v962, %v948
      %v1395 = vunpack.c.l.b16 %v315
      %v1396 = vunpack.c.l.b16 %v316
      %v1397 = vunpack.c.l.b16 %v317
      %v1398 = vunpack.c.l.b16 %v318
      %v1399 = vunpack.c.l.b16 %v319
      %v1400 = vunpack.c.l.b16 %v320
      %v1401 = vunpack.c.l.b16 %v321
      %v1402 = vunpack.c.l.b16 %v322
      %v1403 = vunpack.c.l.b16 %v323
      %v1404 = vunpack.c.l.b16 %v324
      %v1405 = vunpack.c.l.b16 %v325
      %v1406 = vunpack.c.l.b16 %v326
      %v1407 = vunpack.c.l.b16 %v327
      %v1408 = vunpack.c.l.b16 %v328
      %v1409 = vunpack.c.l.b16 %v329
      %v1410 = vunpack.c.l.b16 %v330
      %v1411 = vunpack.c.l.b16 %v331
      %v1412 = vunpack.c.l.b16 %v332
      %v1413 = vunpack.c.l.b16 %v333
      %v1414 = vunpack.c.l.b16 %v334
      %v1415 = vunpack.c.l.b16 %v335
      %v1416 = vunpack.c.l.b16 %v336
      %v1417 = vunpack.c.l.b16 %v337
      %v1418 = vunpack.c.l.b16 %v338
      %v1419 = vunpack.c.l.b16 %v339
      %v1420 = vunpack.c.l.b16 %v340
      %v1421 = vunpack.c.l.b16 %v341
      %v1422 = vunpack.c.l.b16 %v342
      %v1423 = vunpack.c.l.b16 %v343
      %v1424 = vunpack.c.l.b16 %v344
      %v1425 = vunpack.c.l.b16 %v345
      %v1426 = vunpack.c.l.b16 %v346
      %v1427 = vunpack.c.l.b16 %v347
      %v1428 = vunpack.c.l.b16 %v348
      %v1429 = vunpack.c.l.b16 %v349
      %v1430 = vunpack.c.l.b16 %v350
      %v1431 = vunpack.c.l.b16 %v351
      %v1432 = vunpack.c.l.b16 %v352
      %v1433 = vunpack.c.l.b16 %v353
      %v1434 = vunpack.c.l.b16 %v354
      %v1435 = vunpack.c.l.b16 %v355
      %v1436 = vunpack.c.l.b16 %v356
      %v1437 = vunpack.c.l.b16 %v357
      %v1438 = vunpack.c.l.b16 %v358
      %v1439 = vunpack.c.l.b16 %v359
      %v1440 = vunpack.c.l.b16 %v360
      %v1441 = vunpack.c.l.b16 %v361
      %v1442 = vunpack.c.l.b16 %v362
      %v1443 = vunpack.c.l.b16 %v363
      %v1444 = vunpack.c.l.b16 %v364
      %v1445 = vunpack.c.l.b16 %v365
      %v1446 = vunpack.c.l.b16 %v366
      %v1447 = vunpack.c.l.b16 %v367
      %v1448 = vunpack.c.l.b16 %v368
      %v1449 = vunpack.c.l.b16 %v369
      %v1450 = vunpack.c.l.b16 %v370
      %v1451 = vunpack.c.l.b16 %v371
      %v1452 = vunpack.c.l.b16 %v372
      %v1453 = vunpack.c.l.b16 %v373
      %v1454 = vunpack.c.l.b16 %v374
      %v1455 = vunpack.c.l.b16 %v375
      %v1456 = vunpack.c.l.b16 %v376
      %v1457 = vunpack.c.l.b16 %v377
      %v1458 = vunpack.c.l.b16 %v378
      %v1459 = vunpack.c.l.b16 %v379
      %v1460 = vunpack.c.l.b16 %v380
      %v1461 = vunpack.c.l.b16 %v381
      %v1462 = vunpack.c.l.b16 %v382
      %v1463 = vunpack.c.l.b16 %v383
      %v1464 = vunpack.c.l.b16 %v384
      %v1465 = vunpack.c.l.b16 %v385
      %v1466 = vunpack.c.l.b16 %v386
      %v1467 = vunpack.c.l.b16 %v387
      %v1468 = vunpack.c.l.b16 %v388
      %v1469 = vunpack.c.l.b16 %v389
      %v1470 = vunpack.c.l.b16 %v390
      %v1471 = vunpack.c.l.b16 %v391
      %v1472 = vunpack.c.l.b16 %v392
      %v1473 = vunpack.c.l.b16 %v393
      %v1474 = vunpack.c.l.b16 %v394
      %v1475 = vunpack.c.l.b16 %v395
      %v1476 = vunpack.c.l.b16 %v396
      %v1477 = vunpack.c.l.b16 %v397
      %v1478 = vunpack.c.l.b16 %v398
      %v1479 = vunpack.c.l.b16 %v399
      %v1480 = vunpack.c.l.b16 %v400
      %v1481 = vunpack.c.l.b16 %v401
      %v1482 = vunpack.c.l.b16 %v402
      %v1483 = vunpack.c.l.b16 %v403
      %v1484 = vunpack.c.l.b16 %v404
      %v1485 = vunpack.c.l.b16 %v405
      %v1486 = vunpack.c.l.b16 %v406
      %v1487 = vunpack.c.l.b16 %v407
      %v1488 = vunpack.c.l.b16 %v408
      %v1489 = vunpack.c.l.b16 %v409
      %v1490 = vunpack.c.l.b16 %v410
      %v1491 = vunpack.c.l.b16 %v411
      %v1492 = vunpack.c.l.b16 %v412
      %v1493 = vunpack.c.l.b16 %v413
      %v1494 = vunpack.c.l.b16 %v414
      %v1495 = vunpack.c.l.b16 %v415
      %v1496 = vunpack.c.l.b16 %v416
      %v1497 = vunpack.c.l.b16 %v417
      %v1498 = vunpack.c.l.b16 %v418
      %v1499 = vunpack.c.l.b16 %v419
      %v1500 = vunpack.c.l.b16 %v420
      %v1501 = vunpack.c.l.b16 %v421
      %v1502 = vunpack.c.l.b16 %v422
      %v1503 = vunpack.c.l.b16 %v423
      %v1504 = vunpack.c.l.b16 %v424
      %v1505 = vunpack.c.l.b16 %v425
      %v1506 = vunpack.c.l.b16 %v426
      %v1507 = vunpack.c.l.b16 %v427
      %v1508 = vunpack.c.l.b16 %v428
      %v1509 = vunpack.c.l.b16 %v429
      %v1510 = vunpack.c.l.b16 %v430
      %v1511 = vunpack.c.l.b16 %v431
      %v1512 = vunpack.c.l.b16 %v432
      %v1513 = vunpack.c.l.b16 %v433
      %v1514 = vunpack.c.l.b16 %v434
      %v1515 = vunpack.c.l.b16 %v435
      %v1516 = vunpack.c.l.b16 %v436
      %v1517 = vunpack.c.l.b16 %v437
      %v1518 = vunpack.c.l.b16 %v438
      %v1519 = vunpack.c.l.b16 %v439
      %v1520 = vunpack.c.l.b16 %v440
      %v1521 = vunpack.c.l.b16 %v441
      %v1522 = vunpack.c.l.b16 %v442
      %v1523 = vunpack.c.l.b16 %v443
      %v1524 = vunpack.c.l.b16 %v444
      %v1525 = vunpack.c.l.b16 %v445
      %v1526 = vunpack.c.l.b16 %v446
      %v1527 = vunpack.c.l.b16 %v447
      %v1528 = vunpack.c.l.b16 %v448
      %v1529 = vunpack.c.l.b16 %v449
      %v1530 = vunpack.c.l.b16 %v450
      %v1531 = vunpack.c.l.b16 %v451
      %v1532 = vunpack.c.l.b16 %v452
      %v1533 = vunpack.c.l.b16 %v453
      %v1534 = vunpack.c.l.b16 %v454
      %v1535 = vunpack.c.l.b16 %v455
      %v1536 = vunpack.c.l.b16 %v456
      %v1537 = vunpack.c.l.b16 %v457
      %v1538 = vunpack.c.l.b16 %v458
      %v1539 = vunpack.c.l.b16 %v459
      %v1540 = vunpack.c.l.b16 %v460
      %v1541 = vunpack.c.l.b16 %v461
      %v1542 = vunpack.c.l.b16 %v462
      %v1543 = vunpack.c.l.b16 %v463
      %v1544 = vunpack.c.l.b16 %v464
      %v1545 = vunpack.c.l.b16 %v465
      %v1546 = vunpack.c.l.b16 %v466
      %v1547 = vunpack.c.l.b16 %v467
      %v1548 = vunpack.c.l.b16 %v468
      %v1549 = vunpack.c.l.b16 %v469
      %v1550 = vunpack.c.l.b16 %v470
      %v1551 = vunpack.c.l.b16 %v471
      %v1552 = vunpack.c.l.b16 %v472
      %v1553 = vunpack.c.l.b16 %v473
      %v1554 = vunpack.c.l.b16 %v474
      %v1555 = vunpack.c.l.b16 %v475
      %v1556 = vunpack.c.l.b16 %v476
      %v1557 = vunpack.c.l.b16 %v477
      %v1558 = vunpack.c.l.b16 %v478
      %v1559 = vunpack.c.l.b16 %v479
      %v1560 = vunpack.c.l.b16 %v480
      %v1561 = vunpack.c.l.b16 %v481
      %v1562 = vunpack.c.l.b16 %v482
      %v1563 = vunpack.c.l.b16 %v483
      %v1564 = vunpack.c.l.b16 %v484
      %v1565 = vunpack.c.l.b16 %v485
      %v1566 = vunpack.c.l.b16 %v486
      %v1567 = vunpack.c.l.b16 %v487
      %v1568 = vunpack.c.l.b16 %v488
      %v1569 = vunpack.c.l.b16 %v489
      %v1570 = vunpack.c.l.b16 %v490
      %v1571 = vunpack.c.l.b16 %v491
      %v1572 = vunpack.c.l.b16 %v492
      %v1573 = vunpack.c.l.b16 %v493
      %v1574 = vunpack.c.l.b16 %v494
      %v1575 = vunpack.c.l.b16 %v495
      %v1576 = vunpack.c.l.b16 %v496
      %v1577 = vunpack.c.l.b16 %v497
      %v1578 = vunpack.c.l.b16 %v498
      %v1579 = vunpack.c.l.b16 %v499
      %v1580 = vunpack.c.l.b16 %v500
      %v1581 = vunpack.c.l.b16 %v501
      %v1582 = vunpack.c.l.b16 %v502
      %v1583 = vunpack.c.l.b16 %v503
      %v1584 = vunpack.c.l.b16 %v504
      %v1585 = vunpack.c.l.b16 %v505
      %v1586 = vunpack.c.l.b16 %v506
      %v1587 = vunpack.c.l.b16 %v507
      %v1588 = vunpack.c.l.b16 %v508
      %v1589 = vunpack.c.l.b16 %v509
      %v1590 = vunpack.c.l.b16 %v510
      %v1591 = vunpack.c.l.b16 %v511
      %v1592 = vunpack.c.l.b16 %v512
      %v1593 = vunpack.c.l.b16 %v513
      %v1594 = vunpack.c.l.b16 %v514
      %v1595 = vunpack.c.l.b16 %v515
      %v1596 = vunpack.c.l.b16 %v516
      %v1597 = vunpack.c.l.b16 %v517
      %v1598 = vunpack.c.l.b16 %v518
      %v1599 = vunpack.c.l.b16 %v519
      %v1600 = vunpack.c.l.b16 %v520
      %v1601 = vunpack.c.l.b16 %v521
      %v1602 = vunpack.c.l.b16 %v522
      %v1603 = vunpack.c.l.b16 %v523
      %v1604 = vunpack.c.l.b16 %v524
      %v1605 = vunpack.c.l.b16 %v525
      %v1606 = vunpack.c.l.b16 %v526
      %v1607 = vunpack.c.l.b16 %v527
      %v1608 = vunpack.c.l.b16 %v528
      %v1609 = vunpack.c.l.b16 %v529
      %v1610 = vunpack.c.l.b16 %v530
      %v1611 = vpack.c.b16 %v1396, %v1395
      %v1612 = vpack.c.b16 %v1398, %v1397
      %v1613 = vpack.c.b16 %v1400, %v1399
      %v1614 = vpack.c.b16 %v1402, %v1401
      %v1615 = vpack.c.b16 %v1404, %v1403
      %v1616 = vpack.c.b16 %v1406, %v1405
      %v1617 = vpack.c.b16 %v1408, %v1407
      %v1618 = vpack.c.b16 %v1410, %v1409
      %v1619 = vpack.c.b16 %v1412, %v1411
      %v1620 = vpack.c.b16 %v1414, %v1413
      %v1621 = vpack.c.b16 %v1416, %v1415
      %v1622 = vpack.c.b16 %v1418, %v1417
      %v1623 = vpack.c.b16 %v1420, %v1419
      %v1624 = vpack.c.b16 %v1422, %v1421
      %v1625 = vpack.c.b16 %v1424, %v1423
      %v1626 = vpack.c.b16 %v1426, %v1425
      %v1627 = vpack.c.b16 %v1428, %v1427
      %v1628 = vpack.c.b16 %v1430, %v1429
      %v1629 = vpack.c.b16 %v1432, %v1431
      %v1630 = vpack.c.b16 %v1434, %v1433
      %v1631 = vpack.c.b16 %v1436, %v1435
      %v1632 = vpack.c.b16 %v1438, %v1437
      %v1633 = vpack.c.b16 %v1440, %v1439
      %v1634 = vpack.c.b16 %v1442, %v1441
      %v1635 = vpack.c.b16 %v1444, %v1443
      %v1636 = vpack.c.b16 %v1446, %v1445
      %v1637 = vpack.c.b16 %v1448, %v1447
      %v1638 = vpack.c.b16 %v1450, %v1449
      %v1639 = vpack.c.b16 %v1452, %v1451
      %v1640 = vpack.c.b16 %v1454, %v1453
      %v1641 = vpack.c.b16 %v1456, %v1455
      %v1642 = vpack.c.b16 %v1458, %v1457
      %v1643 = vpack.c.b16 %v1460, %v1459
      %v1644 = vpack.c.b16 %v1462, %v1461
      %v1645 = vpack.c.b16 %v1464, %v1463
      %v1646 = vpack.c.b16 %v1466, %v1465
      %v1647 = vpack.c.b16 %v1468, %v1467
      %v1648 = vpack.c.b16 %v1470, %v1469
      %v1649 = vpack.c.b16 %v1472, %v1471
      %v1650 = vpack.c.b16 %v1474, %v1473
      %v1651 = vpack.c.b16 %v1476, %v1475
      %v1652 = vpack.c.b16 %v1478, %v1477
      %v1653 = vpack.c.b16 %v1480, %v1479
      %v1654 = vpack.c.b16 %v1482, %v1481
      %v1655 = vpack.c.b16 %v1484, %v1483
      %v1656 = vpack.c.b16 %v1486, %v1485
      %v1657 = vpack.c.b16 %v1488, %v1487
      %v1658 = vpack.c.b16 %v1490, %v1489
      %v1659 = vpack.c.b16 %v1492, %v1491
      %v1660 = vpack.c.b16 %v1494, %v1493
      %v1661 = vpack.c.b16 %v1496, %v1495
      %v1662 = vpack.c.b16 %v1498, %v1497
      %v1663 = vpack.c.b16 %v1500, %v1499
      %v1664 = vpack.c.b16 %v1502, %v1501
      %v1665 = vpack.c.b16 %v1504, %v1503
      %v1666 = vpack.c.b16 %v1506, %v1505
      %v1667 = vpack.c.b16 %v1508, %v1507
      %v1668 = vpack.c.b16 %v1510, %v1509
      %v1669 = vpack.c.b16 %v1512, %v1511
      %v1670 = vpack.c.b16 %v1514, %v1513
      %v1671 = vpack.c.b16 %v1516, %v1515
      %v1672 = vpack.c.b16 %v1518, %v1517
      %v1673 = vpack.c.b16 %v1520, %v1519
      %v1674 = vpack.c.b16 %v1522, %v1521
      %v1675 = vpack.c.b16 %v1524, %v1523
      %v1676 = vpack.c.b16 %v1526, %v1525
      %v1677 = vpack.c.b16 %v1528, %v1527
      %v1678 = vpack.c.b16 %v1530, %v1529
      %v1679 = vpack.c.b16 %v1532, %v1531
      %v1680 = vpack.c.b16 %v1534, %v1533
      %v1681 = vpack.c.b16 %v1536, %v1535
      %v1682 = vpack.c.b16 %v1538, %v1537
      %v1683 = vpack.c.b16 %v1540, %v1539
      %v1684 = vpack.c.b16 %v1542, %v1541
      %v1685 = vpack.c.b16 %v1544, %v1543
      %v1686 = vpack.c.b16 %v1546, %v1545
      %v1687 = vpack.c.b16 %v1548, %v1547
      %v1688 = vpack.c.b16 %v1550, %v1549
      %v1689 = vpack.c.b16 %v1552, %v1551
      %v1690 = vpack.c.b16 %v1554, %v1553
      %v1691 = vpack.c.b16 %v1556, %v1555
      %v1692 = vpack.c.b16 %v1558, %v1557
      %v1693 = vpack.c.b16 %v1560, %v1559
      %v1694 = vpack.c.b16 %v1562, %v1561
      %v1695 = vpack.c.b16 %v1564, %v1563
      %v1696 = vpack.c.b16 %v1566, %v1565
      %v1697 = vpack.c.b16 %v1568, %v1567
      %v1698 = vpack.c.b16 %v1570, %v1569
      %v1699 = vpack.c.b16 %v1572, %v1571
      %v1700 = vpack.c.b16 %v1574, %v1573
      %v1701 = vpack.c.b16 %v1576, %v1575
      %v1702 = vpack.c.b16 %v1578, %v1577
      %v1703 = vpack.c.b16 %v1580, %v1579
      %v1704 = vpack.c.b16 %v1582, %v1581
      %v1705 = vpack.c.b16 %v1584, %v1583
      %v1706 = vpack.c.b16 %v1586, %v1585
      %v1707 = vpack.c.b16 %v1588, %v1587
      %v1708 = vpack.c.b16 %v1590, %v1589
      %v1709 = vpack.c.b16 %v1592, %v1591
      %v1710 = vpack.c.b16 %v1594, %v1593
      %v1711 = vpack.c.b16 %v1596, %v1595
      %v1712 = vpack.c.b16 %v1598, %v1597
      %v1713 = vpack.c.b16 %v1600, %v1599
      %v1714 = vpack.c.b16 %v1602, %v1601
      %v1715 = vpack.c.b16 %v1604, %v1603
      %v1716 = vpack.c.b16 %v1606, %v1605
      %v1717 = vpack.c.b16 %v1608, %v1607
      %v1718 = vpack.c.b16 %v1610, %v1609
      %vm1827 = vcmask 523264
      %v1829 = vsel %vm1827, %v976, 0
      %v1832 = vsel %vm1827, %v990, 0
      %v1835 = vsel %vm1827, %v1004, 0
      %v1838 = vsel %vm1827, %v1018, 0
      %v1841 = vsel %vm1827, %v1032, 0
      %v1844 = vsel %vm1827, %v1046, 0
      %v1847 = vsel %vm1827, %v1060, 0
      %v1850 = vsel %vm1827, %v1074, 0
      %1852 = vmatprep.subr.bf16.mxu0 0
      %1853 = vmatpush1.bf16.msra.mxu0 %v1611
      %1854 = vmatprep.subr.bf16.mxu0 0
      %1855 = vmatpush1.bf16.msra.mxu0 %v1612
      %1856 = vmatprep.subr.bf16.mxu0 0
      %1857 = vmatpush1.bf16.msra.mxu0 %v1613
      %1858 = vmatprep.subr.bf16.mxu0 0
      %1859 = vmatpush1.bf16.msra.mxu0 %v1614
      %1860 = vmatprep.subr.bf16.mxu0 0
      %1861 = vmatpush1.bf16.msra.mxu0 %v1615
      %1862 = vmatprep.subr.bf16.mxu0 0
      %1863 = vmatpush1.bf16.msra.mxu0 %v1616
      %1864 = vmatprep.subr.bf16.mxu0 0
      %1865 = vmatpush1.bf16.msra.mxu0 %v1617
      %1866 = vmatprep.subr.bf16.mxu0 0
      %1867 = vmatpush1.bf16.msra.mxu0 %v1618
      %1868 = vmatprep.subr.bf16.mxu0 0
      %1869 = vmatpush1.bf16.msra.mxu0 %v1619
      %1870 = vmatprep.subr.bf16.mxu0 0
      %1871 = vmatpush1.bf16.msra.mxu0 %v1620
      %1872 = vmatprep.subr.bf16.mxu0 0
      %1873 = vmatpush1.bf16.msra.mxu0 %v1621
      %1874 = vmatprep.subr.bf16.mxu0 0
      %1875 = vmatpush1.bf16.msra.mxu0 %v1622
      %1876 = vmatprep.subr.bf16.mxu0 0
      %1877 = vmatpush1.bf16.msra.mxu0 %v1623
      %1878 = vmatprep.subr.bf16.mxu0 0
      %1879 = vmatpush1.bf16.msra.mxu0 %v1624
      %1880 = vmatprep.subr.bf16.mxu0 0
      %1881 = vmatpush1.bf16.msra.mxu0 %v1625
      %1882 = vmatprep.subr.bf16.mxu0 0
      %1883 = vmatpush1.bf16.msra.mxu0 %v1626
      %1884 = vmatprep.mubr.bf16.mxu0 %v964
      %1885 = vmatmul.mubr.bf16.gmra.mrb[0].mxu0 %v963
      %v1886 = vpop.f32.mrb[0].mxu0
      %v1887 = vadd.f32 %v550, %v1886
      %v1888 = vpop.f32.mrb[0].mxu0
      %v1889 = vpop.f32.mrb[0].mxu0
      %v1890 = vadd.f32 %v555, %v1889
      %v1891 = vpop.f32.mrb[0].mxu0
      %1892 = vmatprep.mubr.bf16.mxu0 %v978
      %1893 = vmatmul.mubr.bf16.gmra.mrb[0].mxu0 %v977
      %v1894 = vpop.f32.mrb[0].mxu0
      %v1895 = vadd.f32 %v560, %v1894
      %v1896 = vpop.f32.mrb[0].mxu0
      %v1897 = vpop.f32.mrb[0].mxu0
      %v1898 = vadd.f32 %v565, %v1897
      %v1899 = vpop.f32.mrb[0].mxu0
      %1900 = vmatprep.mubr.bf16.mxu0 %v992
      %1901 = vmatmul.mubr.bf16.gmra.mrb[0].mxu0 %v991
      %v1902 = vpop.f32.mrb[0].mxu0
      %v1903 = vadd.f32 %v570, %v1902
      %v1904 = vpop.f32.mrb[0].mxu0
      %v1905 = vpop.f32.mrb[0].mxu0
      %v1906 = vadd.f32 %v575, %v1905
      %v1907 = vpop.f32.mrb[0].mxu0
      %1908 = vmatprep.mubr.bf16.mxu0 %v1006
      %1909 = vmatmul.mubr.bf16.gmra.mrb[0].mxu0 %v1005
      %v1910 = vpop.f32.mrb[0].mxu0
      %v1911 = vadd.f32 %v580, %v1910
      %v1912 = vpop.f32.mrb[0].mxu0
      %v1913 = vpop.f32.mrb[0].mxu0
      %v1914 = vadd.f32 %v585, %v1913
      %v1915 = vpop.f32.mrb[0].mxu0
      %1916 = vmatprep.mubr.bf16.mxu0 %v1020
      %1917 = vmatmul.mubr.bf16.gmra.mrb[0].mxu0 %v1019
      %v1918 = vpop.f32.mrb[0].mxu0
      %v1919 = vadd.f32 %v590, %v1918
      %v1920 = vpop.f32.mrb[0].mxu0
      %v1921 = vpop.f32.mrb[0].mxu0
      %v1922 = vadd.f32 %v595, %v1921
      %v1923 = vpop.f32.mrb[0].mxu0
      %1924 = vmatprep.mubr.bf16.mxu0 %v1034
      %1925 = vmatmul.mubr.bf16.gmra.mrb[0].mxu0 %v1033
      %v1926 = vpop.f32.mrb[0].mxu0
      %v1927 = vadd.f32 %v600, %v1926
      %v1928 = vpop.f32.mrb[0].mxu0
      %v1929 = vpop.f32.mrb[0].mxu0
      %v1930 = vadd.f32 %v605, %v1929
      %v1931 = vpop.f32.mrb[0].mxu0
      %1932 = vmatprep.mubr.bf16.mxu0 %v1048
      %1933 = vmatmul.mubr.bf16.gmra.mrb[0].mxu0 %v1047
      %v1934 = vpop.f32.mrb[0].mxu0
      %v1935 = vadd.f32 %v610, %v1934
      %v1936 = vpop.f32.mrb[0].mxu0
      %v1937 = vpop.f32.mrb[0].mxu0
      %v1938 = vadd.f32 %v615, %v1937
      %v1939 = vpop.f32.mrb[0].mxu0
      %1940 = vmatprep.mubr.bf16.mxu0 %v1062
      %1941 = vmatmul.mubr.bf16.gmra.mrb[0].mxu0 %v1061
      %v1942 = vpop.f32.mrb[0].mxu0
      %v1943 = vadd.f32 %v620, %v1942
      %v1944 = vpop.f32.mrb[0].mxu0
      %v1945 = vpop.f32.mrb[0].mxu0
      %v1946 = vadd.f32 %v625, %v1945
      %v1947 = vpop.f32.mrb[0].mxu0
      %1948 = vdwg.mxu0
      %1949 = vmatprep.subr.bf16.mxu0 0
      %1950 = vmatpush1.bf16.msra.mxu0 %v1627
      %1951 = vmatprep.subr.bf16.mxu0 0
      %1952 = vmatpush1.bf16.msra.mxu0 %v1628
      %1953 = vmatprep.subr.bf16.mxu0 0
      %1954 = vmatpush1.bf16.msra.mxu0 %v1629
      %1955 = vmatprep.subr.bf16.mxu0 0
      %1956 = vmatpush1.bf16.msra.mxu0 %v1630
      %1957 = vmatprep.subr.bf16.mxu0 0
      %1958 = vmatpush1.bf16.msra.mxu0 %v1631
      %1959 = vmatprep.subr.bf16.mxu0 0
      %1960 = vmatpush1.bf16.msra.mxu0 %v1632
      %1961 = vmatprep.subr.bf16.mxu0 0
      %1962 = vmatpush1.bf16.msra.mxu0 %v1633
      %1963 = vmatprep.subr.bf16.mxu0 0
      %1964 = vmatpush1.bf16.msra.mxu0 %v1634
      %1965 = vmatprep.subr.bf16.mxu0 0
      %1966 = vmatpush1.bf16.msra.mxu0 %v1635
      %1967 = vmatprep.subr.bf16.mxu0 0
      %1968 = vmatpush1.bf16.msra.mxu0 %v1636
      %1969 = vmatprep.subr.bf16.mxu0 0
      %1970 = vmatpush1.bf16.msra.mxu0 %v1637
      %1971 = vmatprep.subr.bf16.mxu0 0
      %1972 = vmatpush1.bf16.msra.mxu0 %v1638
      %1973 = vmatprep.subr.bf16.mxu0 0
      %1974 = vmatpush1.bf16.msra.mxu0 %v1639
      %1975 = vmatprep.subr.bf16.mxu0 0
      %1976 = vmatpush1.bf16.msra.mxu0 %v1640
      %1977 = vmatprep.subr.bf16.mxu0 0
      %1978 = vmatpush1.bf16.msra.mxu0 %v1641
      %1979 = vmatprep.subr.bf16.mxu0 0
      %1980 = vmatpush1.bf16.msra.mxu0 %v1642
      %1981 = vmatprep.mubr.bf16.mxu0 %v966
      %1982 = vmatmul.mubr.bf16.gmra.mrb[0].mxu0 %v965
      %v1983 = vpop.f32.mrb[0].mxu0
      %v1984 = vadd.f32 %v1887, %v1983
      %v1985 = vpop.f32.mrb[0].mxu0
      %v1986 = vpop.f32.mrb[0].mxu0
      %v1987 = vadd.f32 %v1890, %v1986
      %v1988 = vpop.f32.mrb[0].mxu0
      %1989 = vmatprep.mubr.bf16.mxu0 %v980
      %1990 = vmatmul.mubr.bf16.gmra.mrb[0].mxu0 %v979
      %v1991 = vpop.f32.mrb[0].mxu0
      %v1992 = vadd.f32 %v1895, %v1991
      %v1993 = vpop.f32.mrb[0].mxu0
      %v1994 = vpop.f32.mrb[0].mxu0
      %v1995 = vadd.f32 %v1898, %v1994
      %v1996 = vpop.f32.mrb[0].mxu0
      %1997 = vmatprep.mubr.bf16.mxu0 %v994
      %1998 = vmatmul.mubr.bf16.gmra.mrb[0].mxu0 %v993
      %v1999 = vpop.f32.mrb[0].mxu0
      %v2000 = vadd.f32 %v1903, %v1999
      %v2001 = vpop.f32.mrb[0].mxu0
      %v2002 = vpop.f32.mrb[0].mxu0
      %v2003 = vadd.f32 %v1906, %v2002
      %v2004 = vpop.f32.mrb[0].mxu0
      %2005 = vmatprep.mubr.bf16.mxu0 %v1008
      %2006 = vmatmul.mubr.bf16.gmra.mrb[0].mxu0 %v1007
      %v2007 = vpop.f32.mrb[0].mxu0
      %v2008 = vadd.f32 %v1911, %v2007
      %v2009 = vpop.f32.mrb[0].mxu0
      %v2010 = vpop.f32.mrb[0].mxu0
      %v2011 = vadd.f32 %v1914, %v2010
      %v2012 = vpop.f32.mrb[0].mxu0
      %2013 = vmatprep.mubr.bf16.mxu0 %v1022
      %2014 = vmatmul.mubr.bf16.gmra.mrb[0].mxu0 %v1021
      %v2015 = vpop.f32.mrb[0].mxu0
      %v2016 = vadd.f32 %v1919, %v2015
      %v2017 = vpop.f32.mrb[0].mxu0
      %v2018 = vpop.f32.mrb[0].mxu0
      %v2019 = vadd.f32 %v1922, %v2018
      %v2020 = vpop.f32.mrb[0].mxu0
      %2021 = vmatprep.mubr.bf16.mxu0 %v1036
      %2022 = vmatmul.mubr.bf16.gmra.mrb[0].mxu0 %v1035
      %v2023 = vpop.f32.mrb[0].mxu0
      %v2024 = vadd.f32 %v1927, %v2023
      %v2025 = vpop.f32.mrb[0].mxu0
      %v2026 = vpop.f32.mrb[0].mxu0
      %v2027 = vadd.f32 %v1930, %v2026
      %v2028 = vpop.f32.mrb[0].mxu0
      %2029 = vmatprep.mubr.bf16.mxu0 %v1050
      %2030 = vmatmul.mubr.bf16.gmra.mrb[0].mxu0 %v1049
      %v2031 = vpop.f32.mrb[0].mxu0
      %v2032 = vadd.f32 %v1935, %v2031
      %v2033 = vpop.f32.mrb[0].mxu0
      %v2034 = vpop.f32.mrb[0].mxu0
      %v2035 = vadd.f32 %v1938, %v2034
      %v2036 = vpop.f32.mrb[0].mxu0
      %2037 = vmatprep.mubr.bf16.mxu0 %v1064
      %2038 = vmatmul.mubr.bf16.gmra.mrb[0].mxu0 %v1063
      %v2039 = vpop.f32.mrb[0].mxu0
      %v2040 = vadd.f32 %v1943, %v2039
      %v2041 = vpop.f32.mrb[0].mxu0
      %v2042 = vpop.f32.mrb[0].mxu0
      %v2043 = vadd.f32 %v1946, %v2042
      %v2044 = vpop.f32.mrb[0].mxu0
      %2045 = vdwg.mxu0
      %2046 = vmatprep.subr.bf16.mxu0 0
      %2047 = vmatpush1.bf16.msra.mxu0 %v1643
      %2048 = vmatprep.subr.bf16.mxu0 0
      %2049 = vmatpush1.bf16.msra.mxu0 %v1644
      %2050 = vmatprep.subr.bf16.mxu0 0
      %2051 = vmatpush1.bf16.msra.mxu0 %v1645
      %2052 = vmatprep.subr.bf16.mxu0 0
      %2053 = vmatpush1.bf16.msra.mxu0 %v1646
      %2054 = vmatprep.subr.bf16.mxu0 0
      %2055 = vmatpush1.bf16.msra.mxu0 %v1647
      %2056 = vmatprep.subr.bf16.mxu0 0
      %2057 = vmatpush1.bf16.msra.mxu0 %v1648
      %2058 = vmatprep.subr.bf16.mxu0 0
      %2059 = vmatpush1.bf16.msra.mxu0 %v1649
      %2060 = vmatprep.subr.bf16.mxu0 0
      %2061 = vmatpush1.bf16.msra.mxu0 %v1650
      %2062 = vmatprep.subr.bf16.mxu0 0
      %2063 = vmatpush1.bf16.msra.mxu0 %v1651
      %2064 = vmatprep.subr.bf16.mxu0 0
      %2065 = vmatpush1.bf16.msra.mxu0 %v1652
      %2066 = vmatprep.subr.bf16.mxu0 0
      %2067 = vmatpush1.bf16.msra.mxu0 %v1653
      %2068 = vmatprep.subr.bf16.mxu0 0
      %2069 = vmatpush1.bf16.msra.mxu0 %v1654
      %2070 = vmatprep.subr.bf16.mxu0 0
      %2071 = vmatpush1.bf16.msra.mxu0 %v1655
      %2072 = vmatprep.subr.bf16.mxu0 0
      %2073 = vmatpush1.bf16.msra.mxu0 %v1656
      %2074 = vmatprep.subr.bf16.mxu0 0
      %2075 = vmatpush1.bf16.msra.mxu0 %v1657
      %2076 = vmatprep.subr.bf16.mxu0 0
      %2077 = vmatpush1.bf16.msra.mxu0 %v1658
      %2078 = vmatprep.mubr.bf16.mxu0 %v968
      %2079 = vmatmul.mubr.bf16.gmra.mrb[0].mxu0 %v967
      %v2080 = vpop.f32.mrb[0].mxu0
      %v2081 = vadd.f32 %v1984, %v2080
      %v2082 = vpop.f32.mrb[0].mxu0
      %v2083 = vpop.f32.mrb[0].mxu0
      %v2084 = vadd.f32 %v1987, %v2083
      %v2085 = vpop.f32.mrb[0].mxu0
      %2086 = vmatprep.mubr.bf16.mxu0 %v982
      %2087 = vmatmul.mubr.bf16.gmra.mrb[0].mxu0 %v981
      %v2088 = vpop.f32.mrb[0].mxu0
      %v2089 = vadd.f32 %v1992, %v2088
      %v2090 = vpop.f32.mrb[0].mxu0
      %v2091 = vpop.f32.mrb[0].mxu0
      %v2092 = vadd.f32 %v1995, %v2091
      %v2093 = vpop.f32.mrb[0].mxu0
      %2094 = vmatprep.mubr.bf16.mxu0 %v996
      %2095 = vmatmul.mubr.bf16.gmra.mrb[0].mxu0 %v995
      %v2096 = vpop.f32.mrb[0].mxu0
      %v2097 = vadd.f32 %v2000, %v2096
      %v2098 = vpop.f32.mrb[0].mxu0
      %v2099 = vpop.f32.mrb[0].mxu0
      %v2100 = vadd.f32 %v2003, %v2099
      %v2101 = vpop.f32.mrb[0].mxu0
      %2102 = vmatprep.mubr.bf16.mxu0 %v1010
      %2103 = vmatmul.mubr.bf16.gmra.mrb[0].mxu0 %v1009
      %v2104 = vpop.f32.mrb[0].mxu0
      %v2105 = vadd.f32 %v2008, %v2104
      %v2106 = vpop.f32.mrb[0].mxu0
      %v2107 = vpop.f32.mrb[0].mxu0
      %v2108 = vadd.f32 %v2011, %v2107
      %v2109 = vpop.f32.mrb[0].mxu0
      %2110 = vmatprep.mubr.bf16.mxu0 %v1024
      %2111 = vmatmul.mubr.bf16.gmra.mrb[0].mxu0 %v1023
      %v2112 = vpop.f32.mrb[0].mxu0
      %v2113 = vadd.f32 %v2016, %v2112
      %v2114 = vpop.f32.mrb[0].mxu0
      %v2115 = vpop.f32.mrb[0].mxu0
      %v2116 = vadd.f32 %v2019, %v2115
      %v2117 = vpop.f32.mrb[0].mxu0
      %2118 = vmatprep.mubr.bf16.mxu0 %v1038
      %2119 = vmatmul.mubr.bf16.gmra.mrb[0].mxu0 %v1037
      %v2120 = vpop.f32.mrb[0].mxu0
      %v2121 = vadd.f32 %v2024, %v2120
      %v2122 = vpop.f32.mrb[0].mxu0
      %v2123 = vpop.f32.mrb[0].mxu0
      %v2124 = vadd.f32 %v2027, %v2123
      %v2125 = vpop.f32.mrb[0].mxu0
      %2126 = vmatprep.mubr.bf16.mxu0 %v1052
      %2127 = vmatmul.mubr.bf16.gmra.mrb[0].mxu0 %v1051
      %v2128 = vpop.f32.mrb[0].mxu0
      %v2129 = vadd.f32 %v2032, %v2128
      %v2130 = vpop.f32.mrb[0].mxu0
      %v2131 = vpop.f32.mrb[0].mxu0
      %v2132 = vadd.f32 %v2035, %v2131
      %v2133 = vpop.f32.mrb[0].mxu0
      %2134 = vmatprep.mubr.bf16.mxu0 %v1066
      %2135 = vmatmul.mubr.bf16.gmra.mrb[0].mxu0 %v1065
      %v2136 = vpop.f32.mrb[0].mxu0
      %v2137 = vadd.f32 %v2040, %v2136
      %v2138 = vpop.f32.mrb[0].mxu0
      %v2139 = vpop.f32.mrb[0].mxu0
      %v2140 = vadd.f32 %v2043, %v2139
      %v2141 = vpop.f32.mrb[0].mxu0
      %2142 = vdwg.mxu0
      %2143 = vmatprep.subr.bf16.mxu0 0
      %2144 = vmatpush1.bf16.msra.mxu0 %v1659
      %2145 = vmatprep.subr.bf16.mxu0 0
      %2146 = vmatpush1.bf16.msra.mxu0 %v1660
      %2147 = vmatprep.subr.bf16.mxu0 0
      %2148 = vmatpush1.bf16.msra.mxu0 %v1661
      %2149 = vmatprep.subr.bf16.mxu0 0
      %2150 = vmatpush1.bf16.msra.mxu0 %v1662
      %2151 = vmatprep.subr.bf16.mxu0 0
      %2152 = vmatpush1.bf16.msra.mxu0 %v1663
      %2153 = vmatprep.subr.bf16.mxu0 0
      %2154 = vmatpush1.bf16.msra.mxu0 %v1664
      %2155 = vmatprep.subr.bf16.mxu0 0
      %2156 = vmatpush1.bf16.msra.mxu0 %v1665
      %2157 = vmatprep.subr.bf16.mxu0 0
      %2158 = vmatpush1.bf16.msra.mxu0 %v1666
      %2159 = vmatprep.subr.bf16.mxu0 0
      %2160 = vmatpush1.bf16.msra.mxu0 %v1667
      %2161 = vmatprep.subr.bf16.mxu0 0
      %2162 = vmatpush1.bf16.msra.mxu0 %v1668
      %2163 = vmatprep.subr.bf16.mxu0 0
      %2164 = vmatpush1.bf16.msra.mxu0 %v1669
      %2165 = vmatprep.subr.bf16.mxu0 0
      %2166 = vmatpush1.bf16.msra.mxu0 %v1670
      %2167 = vmatprep.subr.bf16.mxu0 0
      %2168 = vmatpush1.bf16.msra.mxu0 %v1671
      %2169 = vmatprep.subr.bf16.mxu0 0
      %2170 = vmatpush1.bf16.msra.mxu0 %v1672
      %2171 = vmatprep.subr.bf16.mxu0 0
      %2172 = vmatpush1.bf16.msra.mxu0 %v1673
      %2173 = vmatprep.subr.bf16.mxu0 0
      %2174 = vmatpush1.bf16.msra.mxu0 %v1674
      %2175 = vmatprep.mubr.bf16.mxu0 %v970
      %2176 = vmatmul.mubr.bf16.gmra.mrb[0].mxu0 %v969
      %v2177 = vpop.f32.mrb[0].mxu0
      %v2178 = vadd.f32 %v2081, %v2177
      %v2179 = vpop.f32.mrb[0].mxu0
      %v2180 = vpop.f32.mrb[0].mxu0
      %v2181 = vadd.f32 %v2084, %v2180
      %v2182 = vpop.f32.mrb[0].mxu0
      %2183 = vmatprep.mubr.bf16.mxu0 %v984
      %2184 = vmatmul.mubr.bf16.gmra.mrb[0].mxu0 %v983
      %v2185 = vpop.f32.mrb[0].mxu0
      %v2186 = vadd.f32 %v2089, %v2185
      %v2187 = vpop.f32.mrb[0].mxu0
      %v2188 = vpop.f32.mrb[0].mxu0
      %v2189 = vadd.f32 %v2092, %v2188
      %v2190 = vpop.f32.mrb[0].mxu0
      %2191 = vmatprep.mubr.bf16.mxu0 %v998
      %2192 = vmatmul.mubr.bf16.gmra.mrb[0].mxu0 %v997
      %v2193 = vpop.f32.mrb[0].mxu0
      %v2194 = vadd.f32 %v2097, %v2193
      %v2195 = vpop.f32.mrb[0].mxu0
      %v2196 = vpop.f32.mrb[0].mxu0
      %v2197 = vadd.f32 %v2100, %v2196
      %v2198 = vpop.f32.mrb[0].mxu0
      %2199 = vmatprep.mubr.bf16.mxu0 %v1012
      %2200 = vmatmul.mubr.bf16.gmra.mrb[0].mxu0 %v1011
      %v2201 = vpop.f32.mrb[0].mxu0
      %v2202 = vadd.f32 %v2105, %v2201
      %v2203 = vpop.f32.mrb[0].mxu0
      %v2204 = vpop.f32.mrb[0].mxu0
      %v2205 = vadd.f32 %v2108, %v2204
      %v2206 = vpop.f32.mrb[0].mxu0
      %2207 = vmatprep.mubr.bf16.mxu0 %v1026
      %2208 = vmatmul.mubr.bf16.gmra.mrb[0].mxu0 %v1025
      %v2209 = vpop.f32.mrb[0].mxu0
      %v2210 = vadd.f32 %v2113, %v2209
      %v2211 = vpop.f32.mrb[0].mxu0
      %v2212 = vpop.f32.mrb[0].mxu0
      %v2213 = vadd.f32 %v2116, %v2212
      %v2214 = vpop.f32.mrb[0].mxu0
      %2215 = vmatprep.mubr.bf16.mxu0 %v1040
      %2216 = vmatmul.mubr.bf16.gmra.mrb[0].mxu0 %v1039
      %v2217 = vpop.f32.mrb[0].mxu0
      %v2218 = vadd.f32 %v2121, %v2217
      %v2219 = vpop.f32.mrb[0].mxu0
      %v2220 = vpop.f32.mrb[0].mxu0
      %v2221 = vadd.f32 %v2124, %v2220
      %v2222 = vpop.f32.mrb[0].mxu0
      %2223 = vmatprep.mubr.bf16.mxu0 %v1054
      %2224 = vmatmul.mubr.bf16.gmra.mrb[0].mxu0 %v1053
      %v2225 = vpop.f32.mrb[0].mxu0
      %v2226 = vadd.f32 %v2129, %v2225
      %v2227 = vpop.f32.mrb[0].mxu0
      %v2228 = vpop.f32.mrb[0].mxu0
      %v2229 = vadd.f32 %v2132, %v2228
      %v2230 = vpop.f32.mrb[0].mxu0
      %2231 = vmatprep.mubr.bf16.mxu0 %v1068
      %2232 = vmatmul.mubr.bf16.gmra.mrb[0].mxu0 %v1067
      %v2233 = vpop.f32.mrb[0].mxu0
      %v2234 = vadd.f32 %v2137, %v2233
      %v2235 = vpop.f32.mrb[0].mxu0
      %v2236 = vpop.f32.mrb[0].mxu0
      %v2237 = vadd.f32 %v2140, %v2236
      %v2238 = vpop.f32.mrb[0].mxu0
      %2239 = vdwg.mxu0
      %2240 = vmatprep.subr.bf16.mxu0 0
      %2241 = vmatpush1.bf16.msra.mxu0 %v1675
      %2242 = vmatprep.subr.bf16.mxu0 0
      %2243 = vmatpush1.bf16.msra.mxu0 %v1676
      %2244 = vmatprep.subr.bf16.mxu0 0
      %2245 = vmatpush1.bf16.msra.mxu0 %v1677
      %2246 = vmatprep.subr.bf16.mxu0 0
      %2247 = vmatpush1.bf16.msra.mxu0 %v1678
      %2248 = vmatprep.subr.bf16.mxu0 0
      %2249 = vmatpush1.bf16.msra.mxu0 %v1679
      %2250 = vmatprep.subr.bf16.mxu0 0
      %2251 = vmatpush1.bf16.msra.mxu0 %v1680
      %2252 = vmatprep.subr.bf16.mxu0 0
      %2253 = vmatpush1.bf16.msra.mxu0 %v1681
      %2254 = vmatprep.subr.bf16.mxu0 0
      %2255 = vmatpush1.bf16.msra.mxu0 %v1682
      %2256 = vmatprep.subr.bf16.mxu0 0
      %2257 = vmatpush1.bf16.msra.mxu0 %v1683
      %2258 = vmatprep.subr.bf16.mxu0 0
      %2259 = vmatpush1.bf16.msra.mxu0 %v1684
      %2260 = vmatprep.subr.bf16.mxu0 0
      %2261 = vmatpush1.bf16.msra.mxu0 %v1685
      %2262 = vmatprep.subr.bf16.mxu0 0
      %2263 = vmatpush1.bf16.msra.mxu0 %v1686
      %2264 = vmatprep.subr.bf16.mxu0 0
      %2265 = vmatpush1.bf16.msra.mxu0 %v1687
      %2266 = vmatprep.subr.bf16.mxu0 0
      %2267 = vmatpush1.bf16.msra.mxu0 %v1688
      %2268 = vmatprep.subr.bf16.mxu0 0
      %2269 = vmatpush1.bf16.msra.mxu0 %v1689
      %2270 = vmatprep.subr.bf16.mxu0 0
      %2271 = vmatpush1.bf16.msra.mxu0 %v1690
      %2272 = vmatprep.mubr.bf16.mxu0 %v972
      %2273 = vmatmul.mubr.bf16.gmra.mrb[0].mxu0 %v971
      %v2274 = vpop.f32.mrb[0].mxu0
      %v2275 = vadd.f32 %v2178, %v2274
      %v2276 = vpop.f32.mrb[0].mxu0
      %v2277 = vpop.f32.mrb[0].mxu0
      %v2278 = vadd.f32 %v2181, %v2277
      %v2279 = vpop.f32.mrb[0].mxu0
      %2280 = vmatprep.mubr.bf16.mxu0 %v986
      %2281 = vmatmul.mubr.bf16.gmra.mrb[0].mxu0 %v985
      %v2282 = vpop.f32.mrb[0].mxu0
      %v2283 = vadd.f32 %v2186, %v2282
      %v2284 = vpop.f32.mrb[0].mxu0
      %v2285 = vpop.f32.mrb[0].mxu0
      %v2286 = vadd.f32 %v2189, %v2285
      %v2287 = vpop.f32.mrb[0].mxu0
      %2288 = vmatprep.mubr.bf16.mxu0 %v1000
      %2289 = vmatmul.mubr.bf16.gmra.mrb[0].mxu0 %v999
      %v2290 = vpop.f32.mrb[0].mxu0
      %v2291 = vadd.f32 %v2194, %v2290
      %v2292 = vpop.f32.mrb[0].mxu0
      %v2293 = vpop.f32.mrb[0].mxu0
      %v2294 = vadd.f32 %v2197, %v2293
      %v2295 = vpop.f32.mrb[0].mxu0
      %2296 = vmatprep.mubr.bf16.mxu0 %v1014
      %2297 = vmatmul.mubr.bf16.gmra.mrb[0].mxu0 %v1013
      %v2298 = vpop.f32.mrb[0].mxu0
      %v2299 = vadd.f32 %v2202, %v2298
      %v2300 = vpop.f32.mrb[0].mxu0
      %v2301 = vpop.f32.mrb[0].mxu0
      %v2302 = vadd.f32 %v2205, %v2301
      %v2303 = vpop.f32.mrb[0].mxu0
      %2304 = vmatprep.mubr.bf16.mxu0 %v1028
      %2305 = vmatmul.mubr.bf16.gmra.mrb[0].mxu0 %v1027
      %v2306 = vpop.f32.mrb[0].mxu0
      %v2307 = vadd.f32 %v2210, %v2306
      %v2308 = vpop.f32.mrb[0].mxu0
      %v2309 = vpop.f32.mrb[0].mxu0
      %v2310 = vadd.f32 %v2213, %v2309
      %v2311 = vpop.f32.mrb[0].mxu0
      %2312 = vmatprep.mubr.bf16.mxu0 %v1042
      %2313 = vmatmul.mubr.bf16.gmra.mrb[0].mxu0 %v1041
      %v2314 = vpop.f32.mrb[0].mxu0
      %v2315 = vadd.f32 %v2218, %v2314
      %v2316 = vpop.f32.mrb[0].mxu0
      %v2317 = vpop.f32.mrb[0].mxu0
      %v2318 = vadd.f32 %v2221, %v2317
      %v2319 = vpop.f32.mrb[0].mxu0
      %2320 = vmatprep.mubr.bf16.mxu0 %v1056
      %2321 = vmatmul.mubr.bf16.gmra.mrb[0].mxu0 %v1055
      %v2322 = vpop.f32.mrb[0].mxu0
      %v2323 = vadd.f32 %v2226, %v2322
      %v2324 = vpop.f32.mrb[0].mxu0
      %v2325 = vpop.f32.mrb[0].mxu0
      %v2326 = vadd.f32 %v2229, %v2325
      %v2327 = vpop.f32.mrb[0].mxu0
      %2328 = vmatprep.mubr.bf16.mxu0 %v1070
      %2329 = vmatmul.mubr.bf16.gmra.mrb[0].mxu0 %v1069
      %v2330 = vpop.f32.mrb[0].mxu0
      %v2331 = vadd.f32 %v2234, %v2330
      %v2332 = vpop.f32.mrb[0].mxu0
      %v2333 = vpop.f32.mrb[0].mxu0
      %v2334 = vadd.f32 %v2237, %v2333
      %v2335 = vpop.f32.mrb[0].mxu0
      %2336 = vdwg.mxu0
      %2337 = vmatprep.subr.bf16.mxu0 0
      %2338 = vmatpush1.bf16.msra.mxu0 %v1691
      %2339 = vmatprep.subr.bf16.mxu0 0
      %2340 = vmatpush1.bf16.msra.mxu0 %v1692
      %2341 = vmatprep.subr.bf16.mxu0 0
      %2342 = vmatpush1.bf16.msra.mxu0 %v1693
      %2343 = vmatprep.subr.bf16.mxu0 0
      %2344 = vmatpush1.bf16.msra.mxu0 %v1694
      %2345 = vmatprep.subr.bf16.mxu0 0
      %2346 = vmatpush1.bf16.msra.mxu0 %v1695
      %2347 = vmatprep.subr.bf16.mxu0 0
      %2348 = vmatpush1.bf16.msra.mxu0 %v1696
      %2349 = vmatprep.subr.bf16.mxu0 0
      %2350 = vmatpush1.bf16.msra.mxu0 %v1697
      %2351 = vmatprep.subr.bf16.mxu0 0
      %2352 = vmatpush1.bf16.msra.mxu0 %v1698
      %2353 = vmatprep.subr.bf16.mxu0 0
      %2354 = vmatpush1.bf16.msra.mxu0 %v1699
      %2355 = vmatprep.subr.bf16.mxu0 0
      %2356 = vmatpush1.bf16.msra.mxu0 %v1700
      %2357 = vmatprep.subr.bf16.mxu0 0
      %2358 = vmatpush1.bf16.msra.mxu0 %v1701
      %2359 = vmatprep.subr.bf16.mxu0 0
      %2360 = vmatpush1.bf16.msra.mxu0 %v1702
      %2361 = vmatprep.subr.bf16.mxu0 0
      %2362 = vmatpush1.bf16.msra.mxu0 %v1703
      %2363 = vmatprep.subr.bf16.mxu0 0
      %2364 = vmatpush1.bf16.msra.mxu0 %v1704
      %2365 = vmatprep.subr.bf16.mxu0 0
      %2366 = vmatpush1.bf16.msra.mxu0 %v1705
      %2367 = vmatprep.subr.bf16.mxu0 0
      %2368 = vmatpush1.bf16.msra.mxu0 %v1706
      %2369 = vmatprep.mubr.bf16.mxu0 %v974
      %2370 = vmatmul.mubr.bf16.gmra.mrb[0].mxu0 %v973
      %v2371 = vpop.f32.mrb[0].mxu0
      %v2372 = vadd.f32 %v2275, %v2371
      %v2373 = vpop.f32.mrb[0].mxu0
      %v2374 = vpop.f32.mrb[0].mxu0
      %v2375 = vadd.f32 %v2278, %v2374
      %v2376 = vpop.f32.mrb[0].mxu0
      %2377 = vmatprep.mubr.bf16.mxu0 %v988
      %2378 = vmatmul.mubr.bf16.gmra.mrb[0].mxu0 %v987
      %v2379 = vpop.f32.mrb[0].mxu0
      %v2380 = vadd.f32 %v2283, %v2379
      %v2381 = vpop.f32.mrb[0].mxu0
      %v2382 = vpop.f32.mrb[0].mxu0
      %v2383 = vadd.f32 %v2286, %v2382
      %v2384 = vpop.f32.mrb[0].mxu0
      %2385 = vmatprep.mubr.bf16.mxu0 %v1002
      %2386 = vmatmul.mubr.bf16.gmra.mrb[0].mxu0 %v1001
      %v2387 = vpop.f32.mrb[0].mxu0
      %v2388 = vadd.f32 %v2291, %v2387
      %v2389 = vpop.f32.mrb[0].mxu0
      %v2390 = vpop.f32.mrb[0].mxu0
      %v2391 = vadd.f32 %v2294, %v2390
      %v2392 = vpop.f32.mrb[0].mxu0
      %2393 = vmatprep.mubr.bf16.mxu0 %v1016
      %2394 = vmatmul.mubr.bf16.gmra.mrb[0].mxu0 %v1015
      %v2395 = vpop.f32.mrb[0].mxu0
      %v2396 = vadd.f32 %v2299, %v2395
      %v2397 = vpop.f32.mrb[0].mxu0
      %v2398 = vpop.f32.mrb[0].mxu0
      %v2399 = vadd.f32 %v2302, %v2398
      %v2400 = vpop.f32.mrb[0].mxu0
      %2401 = vmatprep.mubr.bf16.mxu0 %v1030
      %2402 = vmatmul.mubr.bf16.gmra.mrb[0].mxu0 %v1029
      %v2403 = vpop.f32.mrb[0].mxu0
      %v2404 = vadd.f32 %v2307, %v2403
      %v2405 = vpop.f32.mrb[0].mxu0
      %v2406 = vpop.f32.mrb[0].mxu0
      %v2407 = vadd.f32 %v2310, %v2406
      %v2408 = vpop.f32.mrb[0].mxu0
      %2409 = vmatprep.mubr.bf16.mxu0 %v1044
      %2410 = vmatmul.mubr.bf16.gmra.mrb[0].mxu0 %v1043
      %v2411 = vpop.f32.mrb[0].mxu0
      %v2412 = vadd.f32 %v2315, %v2411
      %v2413 = vpop.f32.mrb[0].mxu0
      %v2414 = vpop.f32.mrb[0].mxu0
      %v2415 = vadd.f32 %v2318, %v2414
      %v2416 = vpop.f32.mrb[0].mxu0
      %2417 = vmatprep.mubr.bf16.mxu0 %v1058
      %2418 = vmatmul.mubr.bf16.gmra.mrb[0].mxu0 %v1057
      %v2419 = vpop.f32.mrb[0].mxu0
      %v2420 = vadd.f32 %v2323, %v2419
      %v2421 = vpop.f32.mrb[0].mxu0
      %v2422 = vpop.f32.mrb[0].mxu0
      %v2423 = vadd.f32 %v2326, %v2422
      %v2424 = vpop.f32.mrb[0].mxu0
      %2425 = vmatprep.mubr.bf16.mxu0 %v1072
      %2426 = vmatmul.mubr.bf16.gmra.mrb[0].mxu0 %v1071
      %v2427 = vpop.f32.mrb[0].mxu0
      %v2428 = vadd.f32 %v2331, %v2427
      %v2429 = vpop.f32.mrb[0].mxu0
      %v2430 = vpop.f32.mrb[0].mxu0
      %v2431 = vadd.f32 %v2334, %v2430
      %v2432 = vpop.f32.mrb[0].mxu0
      %2433 = vdwg.mxu0
      %2434 = vmatprep.subr.bf16.mxu0 0
      %2435 = vmatpush1.bf16.msra.mxu0 %v1707
      %2436 = vmatprep.subr.bf16.mxu0 0
      %2437 = vmatpush1.bf16.msra.mxu0 %v1708
      %2438 = vmatprep.subr.bf16.mxu0 0
      %2439 = vmatpush1.bf16.msra.mxu0 %v1709
      %2440 = vmatprep.subr.bf16.mxu0 0
      %2441 = vmatpush1.bf16.msra.mxu0 %v1710
      %2442 = vmatprep.subr.bf16.mxu0 0
      %2443 = vmatpush1.bf16.msra.mxu0 %v1711
      %2444 = vmatprep.subr.bf16.mxu0 0
      %2445 = vmatpush1.bf16.msra.mxu0 %v1712
      %2446 = vmatprep.subr.bf16.mxu0 0
      %2447 = vmatpush1.bf16.msra.mxu0 %v1713
      %2448 = vmatprep.subr.bf16.mxu0 0
      %2449 = vmatpush1.bf16.msra.mxu0 %v1714
      %2450 = vmatprep.subr.bf16.mxu0 0
      %2451 = vmatpush1.bf16.msra.mxu0 %v1715
      %2452 = vmatprep.subr.bf16.mxu0 0
      %2453 = vmatpush1.bf16.msra.mxu0 %v1716
      %2454 = vmatprep.subr.bf16.mxu0 0
      %2455 = vmatpush1.bf16.msra.mxu0 %v1717
      %2456 = vmatprep.subr.bf16.mxu0 0
      %2457 = vmatpush1.bf16.msra.mxu0 %v1718
      %2458 = vmatprep.subr.bf16.mxu0 0
      %2459 = vmatpush1.bf16.msra.mxu0 0
      %2460 = vmatprep.subr.bf16.mxu0 0
      %2461 = vmatpush1.bf16.msra.mxu0 0
      %2462 = vmatprep.subr.bf16.mxu0 0
      %2463 = vmatpush1.bf16.msra.mxu0 0
      %2464 = vmatprep.subr.bf16.mxu0 0
      %2465 = vmatpush1.bf16.msra.mxu0 0
      %2466 = vmatprep.mubr.bf16.mxu0 %v1829
      %2467 = vmatmul.mubr.bf16.gmra.mrb[0].mxu0 %v975
      %v2468 = vpop.f32.mrb[0].mxu0
      %v2469 = vadd.f32 %v2372, %v2468
      %v2470 = vpop.f32.mrb[0].mxu0
      %v2471 = vpop.f32.mrb[0].mxu0
      %v2472 = vadd.f32 %v2375, %v2471
      %v2473 = vpop.f32.mrb[0].mxu0
      %2474 = vmatprep.mubr.bf16.mxu0 %v1832
      %2475 = vmatmul.mubr.bf16.gmra.mrb[0].mxu0 %v989
      %v2476 = vpop.f32.mrb[0].mxu0
      %v2477 = vadd.f32 %v2380, %v2476
      %v2478 = vpop.f32.mrb[0].mxu0
      %v2479 = vpop.f32.mrb[0].mxu0
      %v2480 = vadd.f32 %v2383, %v2479
      %v2481 = vpop.f32.mrb[0].mxu0
      %2482 = vmatprep.mubr.bf16.mxu0 %v1835
      %2483 = vmatmul.mubr.bf16.gmra.mrb[0].mxu0 %v1003
      %v2484 = vpop.f32.mrb[0].mxu0
      %v2485 = vadd.f32 %v2388, %v2484
      %v2486 = vpop.f32.mrb[0].mxu0
      %v2487 = vpop.f32.mrb[0].mxu0
      %v2488 = vadd.f32 %v2391, %v2487
      %v2489 = vpop.f32.mrb[0].mxu0
      %2490 = vmatprep.mubr.bf16.mxu0 %v1838
      %2491 = vmatmul.mubr.bf16.gmra.mrb[0].mxu0 %v1017
      %v2492 = vpop.f32.mrb[0].mxu0
      %v2493 = vadd.f32 %v2396, %v2492
      %v2494 = vpop.f32.mrb[0].mxu0
      %v2495 = vpop.f32.mrb[0].mxu0
      %v2496 = vadd.f32 %v2399, %v2495
      %v2497 = vpop.f32.mrb[0].mxu0
      %2498 = vmatprep.mubr.bf16.mxu0 %v1841
      %2499 = vmatmul.mubr.bf16.gmra.mrb[0].mxu0 %v1031
      %v2500 = vpop.f32.mrb[0].mxu0
      %v2501 = vadd.f32 %v2404, %v2500
      %v2502 = vpop.f32.mrb[0].mxu0
      %v2503 = vpop.f32.mrb[0].mxu0
      %v2504 = vadd.f32 %v2407, %v2503
      %v2505 = vpop.f32.mrb[0].mxu0
      %2506 = vmatprep.mubr.bf16.mxu0 %v1844
      %2507 = vmatmul.mubr.bf16.gmra.mrb[0].mxu0 %v1045
      %v2508 = vpop.f32.mrb[0].mxu0
      %v2509 = vadd.f32 %v2412, %v2508
      %v2510 = vpop.f32.mrb[0].mxu0
      %v2511 = vpop.f32.mrb[0].mxu0
      %v2512 = vadd.f32 %v2415, %v2511
      %v2513 = vpop.f32.mrb[0].mxu0
      %2514 = vmatprep.mubr.bf16.mxu0 %v1847
      %2515 = vmatmul.mubr.bf16.gmra.mrb[0].mxu0 %v1059
      %v2516 = vpop.f32.mrb[0].mxu0
      %v2517 = vadd.f32 %v2420, %v2516
      %v2518 = vpop.f32.mrb[0].mxu0
      %v2519 = vpop.f32.mrb[0].mxu0
      %v2520 = vadd.f32 %v2423, %v2519
      %v2521 = vpop.f32.mrb[0].mxu0
      %2522 = vmatprep.mubr.bf16.mxu0 %v1850
      %2523 = vmatmul.mubr.bf16.gmra.mrb[0].mxu0 %v1073
      %v2524 = vpop.f32.mrb[0].mxu0
      %v2525 = vadd.f32 %v2428, %v2524
      %v2526 = vpop.f32.mrb[0].mxu0
      %v2527 = vpop.f32.mrb[0].mxu0
      %v2528 = vadd.f32 %v2431, %v2527
      %v2529 = vpop.f32.mrb[0].mxu0
      %2530 = vdwg.mxu0
      %2531 = vst.msk [vmem:[%s201] sm:$0xff] %vm1827, %v2469
      %2532 = vst.msk [vmem:[%s201 + $0x8] sm:$0xff] %vm1827, %v2472
      %2533 = vst.msk [vmem:[%s201 + $0x10] sm:$0xff] %vm1827, %v2477
      %2534 = vst.msk [vmem:[%s201 + $0x18] sm:$0xff] %vm1827, %v2480
      %2535 = vst.msk [vmem:[%s201 + $0x20] sm:$0xff] %vm1827, %v2485
      %2536 = vst.msk [vmem:[%s201 + $0x28] sm:$0xff] %vm1827, %v2488
      %2537 = vst.msk [vmem:[%s201 + $0x30] sm:$0xff] %vm1827, %v2493
      %2538 = vst.msk [vmem:[%s201 + $0x38] sm:$0xff] %vm1827, %v2496
      %2539 = vst.msk [vmem:[%s201 + $0x40] sm:$0xff] %vm1827, %v2501
      %2540 = vst.msk [vmem:[%s201 + $0x48] sm:$0xff] %vm1827, %v2504
      %2541 = vst.msk [vmem:[%s201 + $0x50] sm:$0xff] %vm1827, %v2509
      %2542 = vst.msk [vmem:[%s201 + $0x58] sm:$0xff] %vm1827, %v2512
      %2543 = vst.msk [vmem:[%s201 + $0x60] sm:$0xff] %vm1827, %v2517
      %2544 = vst.msk [vmem:[%s201 + $0x68] sm:$0xff] %vm1827, %v2520
      %2545 = vst.msk [vmem:[%s201 + $0x70] sm:$0xff] %vm1827, %v2525
      %2546 = vst.msk [vmem:[%s201 + $0x78] sm:$0xff] %vm1827, %v2528
      %p2547 = scmp.lt.s32.totalorder %s18, 1
      %s2548 = scalar_select %p2547, %s18, 1
      %p2549 = scmp.lt.s32.totalorder %s19, 0
      %s2550 = scalar_select %p2549, %s19, 0
      %s2551 = smul.addr %s2548, 16
      %s2552 = sadd.s32 %s2550, %s2551
      %s2553 = smul.addr %s2552, 8
      %s2554 = scalar_lea.vmem %s3, %s2553
      // Predicated region
      $region33: #{downsampling_forward.1} parent=31 // pred_check
        %p2555 = pneg %p116
      $region34: #{downsampling_forward.1} parent=31 // pred_check_branch
        %2557 = sbr.rel (%p2555) target = $region36
      $region35: #{downsampling_forward.1} parent=31 // pred_region
        _
      $region36: #{downsampling_forward.1} parent=31 // pred_fallthru
        _
    $region32: #{downsampling_forward.1} parent=5 // pred_fallthru
      _
    %p2558 = scmp.le.s32.totalorder 2, %s9
    // Predicated region
    $region37: #{downsampling_forward.1} parent=5 // pred_check
      %p2559 = pneg %p2558
    $region38: #{downsampling_forward.1} parent=5 // pred_check_branch
      %2561 = sbr.rel (%p2559) target = $region40
    $region39: #{downsampling_forward.1} parent=5 // pred_region
      %s2562 = ssub.s32 %s9, 2
      // Predicated region
      $region41: #{downsampling_forward.1} parent=39 // pred_check
        %p2563 = pneg %p122
      $region42: #{downsampling_forward.1} parent=39 // pred_check_branch
        %2565 = sbr.rel (%p2563) target = $region44
      $region43: #{downsampling_forward.1} parent=39 // pred_region
        %p2566 = scmp.lt.s32.totalorder %s20, 1
        %s2567 = scalar_select %p2566, %s20, 1
        %p2568 = scmp.lt.s32.totalorder %s21, 0
        %s2569 = scalar_select %p2568, %s21, 0
        %s2570 = smul.addr %s2567, 16
        %s2571 = sadd.s32 %s2569, %s2570
        %s2572 = smul.addr %s2571, 8
        %s2573 = scalar_lea.vmem %s3, %s2572
      $region44: #{downsampling_forward.1} parent=39 // pred_fallthru
        _
    $region40: #{downsampling_forward.1} parent=5 // pred_fallthru
      _
  $region6: #{downsampling_forward.1} parent=0 // loop_footer
    %s13 = sadd.s32 1, %s9
  $region7: #{downsampling_forward.1} parent=0 // loop_footer_branch
    %8 = sbr.rel target = $region3
  $region8: #{downsampling_forward.1} parent=0 // loop_exit
    _

</llo_original>
